<compile_context>
chip_gen: v7x
topology: tpu7x:2x2x1
jax: 0.10.0
libtpu: 0.0.40
codegen_flags: <defaults>
</compile_context>

<pallas_src>
import jax
import jax.numpy as jnp
from jax.experimental import pallas as pl
from jax.experimental.pallas import tpu as pltpu


# --------------------------------------------------------------------------- #
# Kernels
# --------------------------------------------------------------------------- #
def gc1_kernel(adj_ref, xcat_ref, wcat_ref, w1_ref, b1_ref, h1_ref, acc_ref):
    """h1 = relu(adj @ (X_cat @ W_cat @ W1) + b1), reduction over grid axis 1."""
    @pl.when(pl.program_id(1) == 0)
    def _():
        acc_ref[...] = jnp.zeros_like(acc_ref)

    # Tiny weight fold: [C, nfeat] @ [nfeat, nhid]  (parameter-sized, negligible).
    wc1 = jnp.dot(wcat_ref[...], w1_ref[...], preferred_element_type=jnp.float32)
    # Embedding+gc1 support for this K-block of rows: [TK, C] @ [C, nhid] (f32).
    s1 = jnp.dot(xcat_ref[...], wc1, preferred_element_type=jnp.float32)
    # Big adjacency matmul: bf16 operands, f32 accumulation.
    acc_ref[...] += jnp.dot(adj_ref[...], s1.astype(jnp.bfloat16),
                            preferred_element_type=jnp.float32)

    @pl.when(pl.program_id(1) == pl.num_programs(1) - 1)
    def _():
        h1_ref[...] = jnp.maximum(acc_ref[...] + b1_ref[...], 0.0)


def gc2_kernel(adj_ref, h1_ref, w2_ref, b2_ref, whead_ref, bhead_ref,
               out_ref, acc_ref):
    """h2 = adj @ (h1 @ W2) + b2; then log_softmax + fused sigmoid heads,
    packed into a lane-dense [TM, 128] output block."""
    @pl.when(pl.program_id(1) == 0)
    def _():
        acc_ref[...] = jnp.zeros_like(acc_ref)

    s2 = jnp.dot(h1_ref[...], w2_ref[...], preferred_element_type=jnp.float32)
    acc_ref[...] += jnp.dot(adj_ref[...], s2.astype(jnp.bfloat16),
                            preferred_element_type=jnp.float32)

    @pl.when(pl.program_id(1) == pl.num_programs(1) - 1)
    def _():
        h2 = acc_ref[...] + b2_ref[...]                       # [TM, nclass] f32
        # log_softmax along dim=1 (stable)
        m = jnp.max(h2, axis=1, keepdims=True)
        z = h2 - m
        lse = jnp.log(jnp.sum(jnp.exp(z), axis=1, keepdims=True))
        lsm = z - lse
        # fused heads: sigmoid(h2 @ [Wy|Wa] + [by|ba])  -> [TM, 4]
        hd = jnp.dot(h2, whead_ref[...],
                     preferred_element_type=jnp.float32) + bhead_ref[...]
        sig = pl.reciprocal(1.0 + jnp.exp(-hd), approx=True)   # EUP
        # single unmasked store of a lane-dense packed block
        pad_w = out_ref.shape[1] - (2 * h2.shape[1] + sig.shape[1])
        pad = jnp.zeros((h2.shape[0], pad_w), jnp.float32)
        out_ref[...] = jnp.concatenate([h2, lsm, sig, pad], axis=1)


# --------------------------------------------------------------------------- #
# Wrapper
# --------------------------------------------------------------------------- #
def _build_embedding_operands(inputx, nums, params, nfeat):
    """Replicates the PyTorch sequential slice-assignments exactly (later wins),
    then folds the three linears + biases into X_cat [N,24] and W_cat [24,nfeat]."""
    N = inputx.shape[0]
    idx = jnp.arange(N)
    R, U, P = 1, 2, 3
    assigns = [(0, nums[0][0], R), (nums[0][0], nums[0][1], U)]
    if nums[1][0] != nums[1][1]:
        assigns += [(nums[0][1], nums[1][0], R), (nums[1][0], nums[1][1], U)]
    if nums[2][0] != nums[2][1]:
        assigns += [(nums[1][1], nums[2][0], R), (nums[2][0], nums[2][1], U)]
    assigns += [(nums[2][1], N, P)]

    sel = jnp.zeros((N,), jnp.int32)
    for lo, hi, lab in assigns:                # sequential overwrite == PyTorch order
        sel = jnp.where((idx >= lo) & (idx < hi), lab, sel)
    mr = (sel == R).astype(jnp.float32)[:, None]
    mu = (sel == U).astype(jnp.float32)[:, None]
    mp = (sel == P).astype(jnp.float32)[:, None]

    # X_cat = [inp*mr | inp*mu | inp*mp | mr | mu | mp]  -> [N, 24]
    xcat = jnp.concatenate([inputx * mr, inputx * mu, inputx * mp, mr, mu, mp],
                           axis=1)
    # W_cat = [Wr(pad in 5->7) ; Wu ; Wp(pad in 6->7) ; br ; bu ; bp] -> [24, nfeat]
    Wr = jnp.zeros((7, nfeat), jnp.float32).at[:5].set(params["Wr"])
    Wp = jnp.zeros((7, nfeat), jnp.float32).at[:6].set(params["Wp"])
    wcat = jnp.concatenate([Wr, params["Wu"], Wp,
                            params["br"], params["bu"], params["bp"]], axis=0)
    return xcat, wcat


def gcn_forward(inputx, adj, nums, params, nfeat, nhid, nclass, *, tm=256, tk=256):
    """inputx: [N, 7] f32 (rows zero-padded to max raw width 7); adj: [N, N] f32.
    nums: concrete Python nested list (same slice logic as the PyTorch model)."""
    N = inputx.shape[0]
    assert nclass == 2, "linear_y/linear_a are nn.Linear(2, 2) in the spec"

    xcat, wcat = _build_embedding_operands(inputx, nums, params, nfeat)
    C = xcat.shape[1]

    # fused heads: [nclass, 4] and [1, 4]
    whead = jnp.concatenate([params["Wy"], params["Wa"]], axis=1)
    bhead = jnp.concatenate([params["by"], params["ba"]], axis=1)

    # bf16 for the only O(N^2) tensor (MXU-native on v5e/v6e/v7x; f32 accumulate).
    adj_bf16 = adj.astype(jnp.bfloat16)

    tm = min(tm, N)
    tk = min(tk, N)
    assert N % tm == 0 and N % tk == 0, "N must be divisible by the tile sizes"
    mb, kb = N // tm, N // tk

    cparams = pltpu.CompilerParams(
        dimension_semantics=("parallel", "arbitrary"))  # rows parallel, K reduction

    # ---- pass 1: h1 = relu(adj @ (X_cat @ W_cat @ W1) + b1) -----------------
    h1 = pl.pallas_call(
        gc1_kernel,
        out_shape=jax.ShapeDtypeStruct((N, nhid), jnp.float32),
        grid_spec=pltpu.PrefetchScalarGridSpec(
            num_scalar_prefetch=0,
            grid=(mb, kb),
            in_specs=[
                pl.BlockSpec((tm, tk), lambda i, k: (i, k)),       # adj (bf16)
                pl.BlockSpec((tk, C), lambda i, k: (k, 0)),        # X_cat
                pl.BlockSpec((C, nfeat), lambda i, k: (0, 0)),     # W_cat
                pl.BlockSpec((nfeat, nhid), lambda i, k: (0, 0)),  # W1
                pl.BlockSpec((1, nhid), lambda i, k: (0, 0)),      # b1
            ],
            out_specs=pl.BlockSpec((tm, nhid), lambda i, k: (i, 0)),
            scratch_shapes=[pltpu.VMEM((tm, nhid), jnp.float32)]),
        compiler_params=cparams,
    )(adj_bf16, xcat, wcat, params["W1"], params["b1"])

    # ---- pass 2: h2 = adj @ (h1 @ W2) + b2 ; log_softmax ; fused heads ------
    OUT_W = 128  # lane-dense packed output: [h2 | log_softmax | sig_y | sig_a | 0-pad]
    packed = pl.pallas_call(
        gc2_kernel,
        out_shape=jax.ShapeDtypeStruct((N, OUT_W), jnp.float32),
        grid_spec=pltpu.PrefetchScalarGridSpec(
            num_scalar_prefetch=0,
            grid=(mb, kb),
            in_specs=[
                pl.BlockSpec((tm, tk), lambda i, k: (i, k)),        # adj (bf16)
                pl.BlockSpec((tk, nhid), lambda i, k: (k, 0)),      # h1
                pl.BlockSpec((nhid, nclass), lambda i, k: (0, 0)),  # W2
                pl.BlockSpec((1, nclass), lambda i, k: (0, 0)),     # b2
                pl.BlockSpec((nclass, 4), lambda i, k: (0, 0)),     # [Wy | Wa]
                pl.BlockSpec((1, 4), lambda i, k: (0, 0)),          # [by | ba]
            ],
            out_specs=pl.BlockSpec((tm, OUT_W), lambda i, k: (i, 0)),
            scratch_shapes=[pltpu.VMEM((tm, nclass), jnp.float32)]),
        compiler_params=cparams,
    )(adj_bf16, h1, params["W2"], params["b2"], whead, bhead)

    h2 = packed[:, :nclass]
    lsm = packed[:, nclass:2 * nclass]
    sig_y = packed[:, 2 * nclass:2 * nclass + 2]
    sig_a = packed[:, 2 * nclass + 2:2 * nclass + 4]
    return h2, lsm, sig_y, sig_a


# --------------------------------------------------------------------------- #
# Pure-JAX reference (same bf16 strategy) + param init + demo
# --------------------------------------------------------------------------- #
def gcn_ref(inputx, adj, nums, params, nfeat, nhid, nclass):
    xcat, wcat = _build_embedding_operands(inputx, nums, params, nfeat)
    adj_bf = adj.astype(jnp.bfloat16)
    wc1 = jnp.dot(wcat, params["W1"], preferred_element_type=jnp.float32)
    s1 = jnp.dot(xcat, wc1, preferred_element_type=jnp.float32).astype(jnp.bfloat16)
    h1 = jnp.maximum(
        jnp.dot(adj_bf, s1, preferred_element_type=jnp.float32) + params["b1"], 0.0)
    s2 = jnp.dot(h1, params["W2"], preferred_element_type=jnp.float32).astype(jnp.bfloat16)
    h2 = jnp.dot(adj_bf, s2, preferred_element_type=jnp.float32) + params["b2"]
    lsm = jax.nn.log_softmax(h2, axis=1)
    y = jax.nn.sigmoid(h2 @ params["Wy"] + params["by"])
    a = jax.nn.sigmoid(h2 @ params["Wa"] + params["ba"])
    return h2, lsm, y, a


def init_params(key, nfeat, nhid, nclass):
    ks = jax.random.split(key, 7)

    def lin(k, fan_in, fan_out):
        # nn.Linear-style weight stored transposed [in, out] for x @ W
        return (jax.random.uniform(k, (fan_in, fan_out), jnp.float32,
                                   minval=-1.0, maxval=1.0) / jnp.sqrt(fan_in))

    return {
        "Wr": lin(ks[0], 5, nfeat), "br": jnp.full((1, nfeat), 0.01, jnp.float32),
        "Wu": lin(ks[1], 7, nfeat), "bu": jnp.full((1, nfeat), 0.02, jnp.float32),
        "Wp": lin(ks[2], 6, nfeat), "bp": jnp.full((1, nfeat), 0.03, jnp.float32),
        # GraphConvolution weights: [in, out], output = adj @ (x @ W) + b
        "W1": lin(ks[3], nfeat, nhid), "b1": jnp.full((1, nhid), 0.005, jnp.float32),
        "W2": lin(ks[4], nhid, nclass), "b2": jnp.full((1, nclass), -0.005, jnp.float32),
        "Wy": lin(ks[5], 2, 2), "by": jnp.full((1, 2), 0.05, jnp.float32),
        "Wa": lin(ks[6], 2, 2), "ba": jnp.full((1, 2), -0.05, jnp.float32),
    }


if __name__ == "__main__":
    # TODO(synk): self.dropout is stored by the module but never applied in
    # forward(), so it is intentionally omitted.
    N, nfeat, nhid, nclass = 512, 32, 32, 2
    # r: rows 0-127 & 256-319, u: rows 128-255 & 320-383, p: rows 384-511
    nums = [[128, 256], [320, 384], [384, 384]]

    key = jax.random.PRNGKey(0)
    k_in, k_adj, k_par = jax.random.split(key, 3)

    # inputx rows have raw widths 5 / 7 / 6 depending on segment; zero-padded to 7.
    inputx = jax.random.normal(k_in, (N, 7), jnp.float32)

    # deterministic symmetric normalized adjacency
    a = (jax.random.uniform(k_adj, (N, N)) > 0.9).astype(jnp.float32)
    a = jnp.maximum(a, a.T) + jnp.eye(N, dtype=jnp.float32)
    d = jnp.sum(a, axis=1)
    dinv = 1.0 / jnp.sqrt(d)
    adj = (a * dinv[:, None]) * dinv[None, :]

    params = init_params(k_par, nfeat, nhid, nclass)

    outs = gcn_forward(inputx, adj, nums, params, nfeat, nhid, nclass)
    outs = jax.block_until_ready(outs)

    refs = gcn_ref(inputx, adj, nums, params, nfeat, nhid, nclass)
    names = ("x", "log_softmax", "sigmoid_y", "sigmoid_a")
    for name, o, r in zip(names, outs, refs):
        assert o.shape == r.shape, (name, o.shape, r.shape)
        assert bool(jnp.allclose(o, r, rtol=3e-2, atol=3e-2)), name
    print("KERNEL_OK")
</pallas_src>

<mosaic_0001>
module attributes {stable_mosaic.version = 11 : i64} {
  func.func @gc1_kernel(%arg0: i32, %arg1: i32, %arg2: memref<256x256xbf16, #tpu.memory_space<vmem>>, %arg3: memref<256x24xf32, #tpu.memory_space<vmem>>, %arg4: memref<24x32xf32, #tpu.memory_space<vmem>>, %arg5: memref<32x32xf32, #tpu.memory_space<vmem>>, %arg6: memref<1x32xf32, #tpu.memory_space<vmem>>, %arg7: memref<256x32xf32, #tpu.memory_space<vmem>>, %arg8: memref<256x32xf32, #tpu.memory_space<vmem>>) attributes {dimension_semantics = [#tpu.dimension_semantics<parallel>, #tpu.dimension_semantics<arbitrary>], iteration_bounds = array<i64: 2, 2>, scalar_prefetch = 0 : i64, scratch_operands = 1 : i64, tpu.core_type = #tpu.core_type<tc>, window_params = [{transform_indices = @transform_0, window_bounds = array<i64: 256, 256>}, {transform_indices = @transform_1, window_bounds = array<i64: 256, 24>}, {pipeline_mode = #tpu.pipeline_mode<synchronous>, transform_indices = @transform_2, window_bounds = array<i64: 24, 32>}, {pipeline_mode = #tpu.pipeline_mode<synchronous>, transform_indices = @transform_3, window_bounds = array<i64: 32, 32>}, {pipeline_mode = #tpu.pipeline_mode<synchronous>, transform_indices = @transform_4, window_bounds = array<i64: 1, 32>}, {transform_indices = @transform_5, window_bounds = array<i64: 256, 32>}]} {
    %c0_i32 = arith.constant 0 : i32
    %0 = arith.cmpi eq, %arg1, %c0_i32 : i32
    %1 = arith.extui %0 : i1 to i32
    %c0_i32_0 = arith.constant 0 : i32
    %2 = arith.cmpi ne, %1, %c0_i32_0 : i32
    scf.if %2 {
      %cst_15 = arith.constant 0.000000e+00 : f32
      %17 = vector.broadcast %cst_15 : f32 to vector<256x32xf32>
      %c0_16 = arith.constant 0 : index
      %c0_17 = arith.constant 0 : index
      %18 = vector.load %arg8[%c0_16, %c0_17] : memref<256x32xf32, #tpu.memory_space<vmem>>, vector<256x32xf32>
      tpu.vector_store %arg8[%c0_16, %c0_17], %17 {strides = array<i32>} : memref<256x32xf32, #tpu.memory_space<vmem>>, vector<256x32xf32>,
    } else {
    }
    %c0 = arith.constant 0 : index
    %c0_1 = arith.constant 0 : index
    %3 = vector.load %arg4[%c0, %c0_1] : memref<24x32xf32, #tpu.memory_space<vmem>>, vector<24x32xf32>
    %c0_2 = arith.constant 0 : index
    %c0_3 = arith.constant 0 : index
    %4 = vector.load %arg5[%c0_2, %c0_3] : memref<32x32xf32, #tpu.memory_space<vmem>>, vector<32x32xf32>
    %cst = arith.constant dense<0.000000e+00> : vector<24x32xf32>
    %5 = tpu.matmul %3, %4, %cst {dimension_numbers = #tpu.dot_dimension_numbers<[1], [0], [0], [1], [0, 0, 1, 1], [], []>} : vector<24x32xf32>, vector<32x32xf32>, vector<24x32xf32> -> vector<24x32xf32>
    %c0_4 = arith.constant 0 : index
    %c0_5 = arith.constant 0 : index
    %6 = vector.load %arg3[%c0_4, %c0_5] : memref<256x24xf32, #tpu.memory_space<vmem>>, vector<256x24xf32>
    %cst_6 = arith.constant dense<0.000000e+00> : vector<256x32xf32>
    %7 = tpu.matmul %6, %5, %cst_6 {dimension_numbers = #tpu.dot_dimension_numbers<[1], [0], [0], [1], [0, 0, 1, 1], [], []>} : vector<256x24xf32>, vector<24x32xf32>, vector<256x32xf32> -> vector<256x32xf32>
    %c0_7 = arith.constant 0 : index
    %c0_8 = arith.constant 0 : index
    %8 = vector.load %arg8[%c0_7, %c0_8] : memref<256x32xf32, #tpu.memory_space<vmem>>, vector<256x32xf32>
    %c0_9 = arith.constant 0 : index
    %c0_10 = arith.constant 0 : index
    %9 = vector.load %arg2[%c0_9, %c0_10] : memref<256x256xbf16, #tpu.memory_space<vmem>>, vector<256x256xbf16>
    %10 = arith.truncf %7 : vector<256x32xf32> to vector<256x32xbf16>
    %cst_11 = arith.constant dense<0.000000e+00> : vector<256x32xf32>
    %11 = tpu.matmul %9, %10, %cst_11 {dimension_numbers = #tpu.dot_dimension_numbers<[1], [0], [0], [1], [0, 0, 1, 1], [], []>} : vector<256x256xbf16>, vector<256x32xbf16>, vector<256x32xf32> -> vector<256x32xf32>
    %12 = arith.addf %8, %11 : vector<256x32xf32>
    %c0_12 = arith.constant 0 : index
    %c0_13 = arith.constant 0 : index
    %13 = vector.load %arg8[%c0_12, %c0_13] : memref<256x32xf32, #tpu.memory_space<vmem>>, vector<256x32xf32>
    tpu.vector_store %arg8[%c0_12, %c0_13], %12 {strides = array<i32>} : memref<256x32xf32, #tpu.memory_space<vmem>>, vector<256x32xf32>,
    %c1_i32 = arith.constant 1 : i32
    %14 = arith.cmpi eq, %arg1, %c1_i32 : i32
    %15 = arith.extui %14 : i1 to i32
    %c0_i32_14 = arith.constant 0 : i32
    %16 = arith.cmpi ne, %15, %c0_i32_14 : i32
    scf.if %16 {
      %c0_15 = arith.constant 0 : index
      %c0_16 = arith.constant 0 : index
      %17 = vector.load %arg8[%c0_15, %c0_16] : memref<256x32xf32, #tpu.memory_space<vmem>>, vector<256x32xf32>
      %c0_17 = arith.constant 0 : index
      %c0_18 = arith.constant 0 : index
      %18 = vector.load %arg6[%c0_17, %c0_18] : memref<1x32xf32, #tpu.memory_space<vmem>>, vector<1x32xf32>
      %19 = vector.broadcast %18 : vector<1x32xf32> to vector<256x32xf32>
      %20 = arith.addf %17, %19 : vector<256x32xf32>
      %cst_19 = arith.constant 0.000000e+00 : f32
      %21 = vector.broadcast %cst_19 : f32 to vector<256x32xf32>
      %22 = arith.maximumf %20, %21 : vector<256x32xf32>
      %c0_20 = arith.constant 0 : index
      %c0_21 = arith.constant 0 : index
      %23 = vector.load %arg7[%c0_20, %c0_21] : memref<256x32xf32, #tpu.memory_space<vmem>>, vector<256x32xf32>
      tpu.vector_store %arg7[%c0_20, %c0_21], %22 {strides = array<i32>} : memref<256x32xf32, #tpu.memory_space<vmem>>, vector<256x32xf32>,
    } else {
    }
    return
  }
  func.func @transform_0(%arg0: i32, %arg1: i32) -> (i32, i32) {
    %c0_i32 = arith.constant 0 : i32
    return %arg0, %arg1 : i32, i32
  }
  func.func @transform_1(%arg0: i32, %arg1: i32) -> (i32, i32) {
    %c0_i32 = arith.constant 0 : i32
    %c0_i32_0 = arith.constant 0 : i32
    return %arg1, %c0_i32 : i32, i32
  }
  func.func @transform_2(%arg0: i32, %arg1: i32) -> (i32, i32) {
    %c0_i32 = arith.constant 0 : i32
    %c0_i32_0 = arith.constant 0 : i32
    %c0_i32_1 = arith.constant 0 : i32
    return %c0_i32, %c0_i32_0 : i32, i32
  }
  func.func @transform_3(%arg0: i32, %arg1: i32) -> (i32, i32) {
    %c0_i32 = arith.constant 0 : i32
    %c0_i32_0 = arith.constant 0 : i32
    %c0_i32_1 = arith.constant 0 : i32
    return %c0_i32, %c0_i32_0 : i32, i32
  }
  func.func @transform_4(%arg0: i32, %arg1: i32) -> (i32, i32) {
    %c0_i32 = arith.constant 0 : i32
    %c0_i32_0 = arith.constant 0 : i32
    %c0_i32_1 = arith.constant 0 : i32
    return %c0_i32, %c0_i32_0 : i32, i32
  }
  func.func @transform_5(%arg0: i32, %arg1: i32) -> (i32, i32) {
    %c0_i32 = arith.constant 0 : i32
    %c0_i32_0 = arith.constant 0 : i32
    return %arg0, %c0_i32 : i32, i32
  }
}

</mosaic_0001>

<llo_original>
// kernel: tpu_custom_call.1
$region0: #{tpu_custom_call.1}
  #allocation0 [shape = 'u32[]', space=smem, size = 0x4, offset = 0x4, fixed_abs, tag = 'smem constant byte address 0x4 - core index']
  #allocation1 [shape = 'u32[144,128]{1,0:T(1,128)}', space=vmem, size = 0x12000, scoped, tag = 'internal scratch']
  #allocation2 [shape = 'f32[256,32]{1,0:T(8,128)}', space=vmem, size = 0x20000, scoped, tag = 'scratch operand']
  %s0 = inlined_call_operand.hbm [shape: bf16[512,512], index: 0, kind: input, shape index: {}]
  %s1 = inlined_call_operand.vmem [shape: f32[512,24], index: 1, kind: input, shape index: {}]
  %s2 = inlined_call_operand.vmem [shape: f32[24,32], index: 2, kind: input, shape index: {}]
  %s3 = inlined_call_operand.vmem [shape: f32[32,32], index: 3, kind: input, shape index: {}]
  %s4 = inlined_call_operand.vmem [shape: f32[1,32], index: 4, kind: input, shape index: {}]
  %s5 = inlined_call_operand.vmem [shape: f32[512,32], index: 5, kind: output, shape index: {}]
  %s6 = sld [smem:[#allocation0]]
  $region65: #{tpu_custom_call.1} parent=0
    _
  %s8 = ssub.s32 1, %s6
  %s9 = scalar_select 0, %s8, %s6
  $region1: #{tpu_custom_call.1} parent=0
    #allocation3 [shape = 'u8[262144]{0}', space=vmem, size = 0x40000, scoped, tag = 'input window, operand 0']
    #allocation4 [shape = 's32[2]{0}', space=sflag, size = 0x8, scoped, tag = 'scoped memory for tpu_custom_call.1']
    %10 = vsyncpa [#allocation4], 0
    %s11 = scalar_lea.sflag [#allocation4], 1
    %12 = vsyncpa %s11, 0
    loop: start=0, step=1, limit=6
    $region2: #{tpu_custom_call.1} parent=1 // loop_pre_header
      _
    $region3: #{tpu_custom_call.1} parent=1 // loop_header
      %s14 = sphi 0, %s18
      %p15 = scmp.ge.s32.totalorder %s14, 6
      %s21 = sphi 0, %s33
      %s22 = sphi 0, %s29
      %s23 = sphi 0, %s21
      %s24 = sphi 0, %s22
      %s25 = sphi 0, %s23
      %s26 = sphi 0, %s24
      %s38 = sphi 0, %s40
      %s41 = sphi 0, %s38
      %s42 = sphi 0, %s41
      %s58 = sphi 0, %s42
      %s64 = sphi 0, %s66
      %s67 = sphi 0, %s64
      %s68 = sphi 0, %s67
      %s84 = sphi 0, %s68
      %s88 = sphi 0, %s88
      %s90 = sphi 0, %s88
      %s91 = sphi 0, %s90
      %s105 = sphi 0, %s91
      %s109 = sphi 0, %s109
      %s111 = sphi 0, %s109
      %s112 = sphi 0, %s111
      %s126 = sphi 0, %s112
      %s130 = sphi 0, %s130
      %s132 = sphi 0, %s130
      %s133 = sphi 0, %s132
      %s147 = sphi 0, %s133
      %s153 = sphi 0, %s155
      %s156 = sphi 0, %s153
      %s157 = sphi 0, %s156
      %s173 = sphi 0, %s157
    $region4: #{tpu_custom_call.1} parent=1 // loop_header_branch
      %17 = sbr.rel (%p15) target = $region8
    $region5: #{tpu_custom_call.1} parent=1 // loop_body
      %s19 = ssub.s32 %s14, 1
      %s20 = ssub.s32 %s14, 2
      %s27 = sadd.s32 1, %s22
      %p28 = scmp.ge.s32.totalorder %s27, 2
      %s29 = scalar_select %p28, 0, %s27
      %s30 = sadd.s32 1, %s21
      %s31 = scalar_select %p28, %s30, %s21
      %p32 = scmp.ge.s32.totalorder %s31, 2
      %s33 = scalar_select %p32, 0, %s31
      %s34 = ssub.s32 %s21, %s33
      %s35 = ssub.s32 %s22, %s29
      %s36 = sor.u32 %s34, %s35
      %p37 = scmp.eq.s32.totalorder %s36, 0
      %s39 = sadd.s32 %s38, 1
      %s40 = scalar_select %p37, %s38, %s39
      %p43 = pneg %p37
      %p44 = scmp.eq.s32.totalorder %s14, 3
      %p45 = por %p43, %p44
      %p46 = scmp.ne.s32.totalorder %s38, %s41
      %p47 = scmp.eq.s32.totalorder %s14, 0
      %p48 = por %p46, %p47
      %p49 = scmp.ne.s32.totalorder %s38, %s41
      %p50 = scmp.eq.s32.totalorder %s19, 3
      %p51 = por %p49, %p50
      %p52 = scmp.ne.s32.totalorder %s41, %s42
      %p53 = scmp.eq.s32.totalorder %s19, 0
      %p54 = por %p52, %p53
      %p55 = scmp.ne.s32.totalorder %s41, %s42
      %p56 = scmp.eq.s32.totalorder %s20, 3
      %p57 = por %p55, %p56
      %p59 = scmp.ne.s32.totalorder %s42, %s58
      %p60 = scmp.eq.s32.totalorder %s20, 0
      %p61 = por %p59, %p60
      %s62 = ssub.s32 %s22, %s29
      %p63 = scmp.eq.s32.totalorder %s62, 0
      %s65 = sadd.s32 %s64, 1
      %s66 = scalar_select %p63, %s64, %s65
      %p69 = pneg %p63
      %p70 = scmp.eq.s32.totalorder %s14, 3
      %p71 = por %p69, %p70
      %p72 = scmp.ne.s32.totalorder %s64, %s67
      %p73 = scmp.eq.s32.totalorder %s14, 0
      %p74 = por %p72, %p73
      %p75 = scmp.ne.s32.totalorder %s64, %s67
      %p76 = scmp.eq.s32.totalorder %s19, 3
      %p77 = por %p75, %p76
      %p78 = scmp.ne.s32.totalorder %s67, %s68
      %p79 = scmp.eq.s32.totalorder %s19, 0
      %p80 = por %p78, %p79
      %p81 = scmp.ne.s32.totalorder %s67, %s68
      %p82 = scmp.eq.s32.totalorder %s20, 3
      %p83 = por %p81, %p82
      %p85 = scmp.ne.s32.totalorder %s68, %s84
      %p86 = scmp.eq.s32.totalorder %s20, 0
      %p87 = por %p85, %p86
      %s89 = sadd.s32 %s88, 1
      %p92 = scmp.eq.s32.totalorder %s14, 3
      %p93 = scmp.ne.s32.totalorder %s88, %s90
      %p94 = scmp.eq.s32.totalorder %s14, 0
      %p95 = por %p93, %p94
      %p96 = scmp.ne.s32.totalorder %s88, %s90
      %p97 = scmp.eq.s32.totalorder %s19, 3
      %p98 = por %p96, %p97
      %p99 = scmp.ne.s32.totalorder %s90, %s91
      %p100 = scmp.eq.s32.totalorder %s19, 0
      %p101 = por %p99, %p100
      %p102 = scmp.ne.s32.totalorder %s90, %s91
      %p103 = scmp.eq.s32.totalorder %s20, 3
      %p104 = por %p102, %p103
      %p106 = scmp.ne.s32.totalorder %s91, %s105
      %p107 = scmp.eq.s32.totalorder %s20, 0
      %p108 = por %p106, %p107
      %s110 = sadd.s32 %s109, 1
      %p113 = scmp.eq.s32.totalorder %s14, 3
      %p114 = scmp.ne.s32.totalorder %s109, %s111
      %p115 = scmp.eq.s32.totalorder %s14, 0
      %p116 = por %p114, %p115
      %p117 = scmp.ne.s32.totalorder %s109, %s111
      %p118 = scmp.eq.s32.totalorder %s19, 3
      %p119 = por %p117, %p118
      %p120 = scmp.ne.s32.totalorder %s111, %s112
      %p121 = scmp.eq.s32.totalorder %s19, 0
      %p122 = por %p120, %p121
      %p123 = scmp.ne.s32.totalorder %s111, %s112
      %p124 = scmp.eq.s32.totalorder %s20, 3
      %p125 = por %p123, %p124
      %p127 = scmp.ne.s32.totalorder %s112, %s126
      %p128 = scmp.eq.s32.totalorder %s20, 0
      %p129 = por %p127, %p128
      %s131 = sadd.s32 %s130, 1
      %p134 = scmp.eq.s32.totalorder %s14, 3
      %p135 = scmp.ne.s32.totalorder %s130, %s132
      %p136 = scmp.eq.s32.totalorder %s14, 0
      %p137 = por %p135, %p136
      %p138 = scmp.ne.s32.totalorder %s130, %s132
      %p139 = scmp.eq.s32.totalorder %s19, 3
      %p140 = por %p138, %p139
      %p141 = scmp.ne.s32.totalorder %s132, %s133
      %p142 = scmp.eq.s32.totalorder %s19, 0
      %p143 = por %p141, %p142
      %p144 = scmp.ne.s32.totalorder %s132, %s133
      %p145 = scmp.eq.s32.totalorder %s20, 3
      %p146 = por %p144, %p145
      %p148 = scmp.ne.s32.totalorder %s133, %s147
      %p149 = scmp.eq.s32.totalorder %s20, 0
      %p150 = por %p148, %p149
      %s151 = ssub.s32 %s21, %s33
      %p152 = scmp.eq.s32.totalorder %s151, 0
      %s154 = sadd.s32 %s153, 1
      %s155 = scalar_select %p152, %s153, %s154
      %p158 = pneg %p152
      %p159 = scmp.eq.s32.totalorder %s14, 3
      %p160 = por %p158, %p159
      %p161 = scmp.ne.s32.totalorder %s153, %s156
      %p162 = scmp.eq.s32.totalorder %s14, 0
      %p163 = por %p161, %p162
      %p164 = scmp.ne.s32.totalorder %s153, %s156
      %p165 = scmp.eq.s32.totalorder %s19, 3
      %p166 = por %p164, %p165
      %p167 = scmp.ne.s32.totalorder %s156, %s157
      %p168 = scmp.eq.s32.totalorder %s19, 0
      %p169 = por %p167, %p168
      %p170 = scmp.ne.s32.totalorder %s156, %s157
      %p171 = scmp.eq.s32.totalorder %s20, 3
      %p172 = por %p170, %p171
      %p174 = scmp.ne.s32.totalorder %s157, %s173
      %p175 = scmp.eq.s32.totalorder %s20, 0
      %p176 = por %p174, %p175
      %p177 = scmp.le.s32.totalorder 1, %s14
      %p178 = scmp.lt.s32.totalorder %s14, 5
      %p179 = pnand %p177, %p178
      %p180 = pneg %p179
      // Predicated region
      $region9: #{tpu_custom_call.1} parent=5 // pred_check
        _
      $region10: #{tpu_custom_call.1} parent=5 // pred_check_branch
        %182 = sbr.rel (%p179) target = $region12
      $region11: #{tpu_custom_call.1} parent=5 // pred_region
        %s183 = ssub.s32 %s14, 1
        // Predicated region
        $region13: #{tpu_custom_call.1} parent=11 // pred_check
          %p184 = pneg %p101
        $region14: #{tpu_custom_call.1} parent=11 // pred_check_branch
          %186 = sbr.rel (%p184) target = $region16
        $region15: #{tpu_custom_call.1} parent=11 // pred_region
          _
        $region16: #{tpu_custom_call.1} parent=11 // pred_fallthru
          _
        // Predicated region
        $region17: #{tpu_custom_call.1} parent=11 // pred_check
          %p187 = pneg %p122
        $region18: #{tpu_custom_call.1} parent=11 // pred_check_branch
          %189 = sbr.rel (%p187) target = $region20
        $region19: #{tpu_custom_call.1} parent=11 // pred_region
          _
        $region20: #{tpu_custom_call.1} parent=11 // pred_fallthru
          _
        // Predicated region
        $region21: #{tpu_custom_call.1} parent=11 // pred_check
          %p190 = pneg %p143
        $region22: #{tpu_custom_call.1} parent=11 // pred_check_branch
          %192 = sbr.rel (%p190) target = $region24
        $region23: #{tpu_custom_call.1} parent=11 // pred_region
          _
        $region24: #{tpu_custom_call.1} parent=11 // pred_fallthru
          _
      $region12: #{tpu_custom_call.1} parent=5 // pred_fallthru
        _
      %p193 = scmp.lt.s32.totalorder %s14, 4
      // Predicated region
      $region25: #{tpu_custom_call.1} parent=5 // pred_check
        %p194 = pneg %p193
      $region26: #{tpu_custom_call.1} parent=5 // pred_check_branch
        %196 = sbr.rel (%p194) target = $region28
      $region27: #{tpu_custom_call.1} parent=5 // pred_region
        // Predicated region
        $region29: #{tpu_custom_call.1} parent=27 // pred_check
          %p197 = pneg %p48
        $region30: #{tpu_custom_call.1} parent=27 // pred_check_branch
          %199 = sbr.rel (%p197) target = $region32
        $region31: #{tpu_custom_call.1} parent=27 // pred_region
          %s200 = sand.u32 %s38, 1
          %s201 = scalar_lea.sflag [#allocation4], %s200
          %s202 = sand.u32 %s38, 1
          %s203 = smul.addr %s202, 256
          %s204 = scalar_lea.vmem [#allocation3], %s203
          %s205 = smul.u32 32, %s21
          %s206 = smul.u32 2, %s22
          %s208 = ssub.s32 4096, 4096
          %209 = vsyncadd %s201, %s208
          %s210 = smul.addr %s205, 4
          %s211 = sadd.s32 %s206, %s210
          %s212 = smul.addr %s211, 64
          %s213 = scalar_lea.hbm %s0, %s212
          %s214 = sshll.u32 %s204, 4
          %s215 = int_to_ptr.vmem [resolvable:$true] %s214
          %220 = dma.hbm_to_vmem [thread:$0]  %s213, 4096, %s215, %s201, 256, 128, 8
        $region32: #{tpu_custom_call.1} parent=27 // pred_fallthru
          _
        // Predicated region
        $region33: #{tpu_custom_call.1} parent=27 // pred_check
          %p221 = pneg %p74
        $region34: #{tpu_custom_call.1} parent=27 // pred_check_branch
          %223 = sbr.rel (%p221) target = $region36
        $region35: #{tpu_custom_call.1} parent=27 // pred_region
          %s224 = smul.u32 32, %s22
          %p225 = scmp.lt.s32.totalorder %s224, 63
          %s226 = scalar_select %p225, %s224, 63
          %s227 = smul.addr %s226, 8
          %s228 = scalar_lea.vmem %s1, %s227
          %s229 = smul.u32 32, %s22
        $region36: #{tpu_custom_call.1} parent=27 // pred_fallthru
          _
      $region28: #{tpu_custom_call.1} parent=5 // pred_fallthru
        _
      %p230 = scmp.le.s32.totalorder 1, %s14
      %p231 = scmp.lt.s32.totalorder %s14, 5
      %p232 = pnand %p230, %p231
      %p233 = pneg %p232
      // Predicated region
      $region37: #{tpu_custom_call.1} parent=5 // pred_check
        _
      $region38: #{tpu_custom_call.1} parent=5 // pred_check_branch
        %235 = sbr.rel (%p232) target = $region40
      $region39: #{tpu_custom_call.1} parent=5 // pred_region
        %s236 = ssub.s32 %s14, 1
        %s237 = sand.u32 %s41, 1
        %s238 = scalar_lea.sflag [#allocation4], %s237
        %s239 = sand.u32 %s41, 1
        %s240 = smul.addr %s239, 256
        %s241 = scalar_lea.vmem [#allocation3], %s240
        // Predicated region
        $region41: #{tpu_custom_call.1} parent=39 // pred_check
          %p242 = pneg %p54
        $region42: #{tpu_custom_call.1} parent=39 // pred_check_branch
          %244 = sbr.rel (%p242) target = $region44
        $region43: #{tpu_custom_call.1} parent=39 // pred_region
          %245 = dma.done %s238, 4096
        $region44: #{tpu_custom_call.1} parent=39 // pred_fallthru
          _
        %s246 = sand.u32 %s41, 1
        %s247 = scalar_lea.sflag [#allocation4], %s246
        %s248 = sand.u32 %s41, 1
        %s249 = smul.addr %s248, 256
        %s250 = scalar_lea.vmem [#allocation3], %s249
        %p251 = pneg %p54
        %p252 = pneg %p51
        %s253 = smul.u32 32, %s24
        %p254 = scmp.lt.s32.totalorder %s253, 63
        %s255 = scalar_select %p254, %s253, 63
        %s256 = smul.addr %s255, 8
        %s257 = scalar_lea.vmem %s1, %s256
        %p258 = pneg %p80
        %p259 = pneg %p77
        %p260 = pneg %p101
        %p261 = pneg %p98
        %p262 = pneg %p122
        %p263 = pneg %p119
        %p264 = pneg %p143
        %p265 = pneg %p140
        %p266 = pneg %p169
        %p267 = pneg %p166
        %s268 = smul.u32 32, %s23
        %p269 = scmp.lt.s32.totalorder %s268, 63
        %s270 = scalar_select %p269, %s268, 63
        %s271 = smul.addr %s270, 8
        %s272 = scalar_lea.vmem %s5, %s271
        %s273 = smul.u32 32, %s23
        %s274 = smul.u32 2, %s24
        %s275 = smul.u32 32, %s24
        %p276 = scmp.lt.s32.totalorder %s275, 63
        %s277 = scalar_select %p276, %s275, 63
        %s278 = smul.addr %s277, 8
        %s279 = scalar_lea.vmem %s1, %s278
        %s280 = smul.u32 32, %s24
        %s281 = smul.u32 32, %s23
        %p282 = scmp.lt.s32.totalorder %s281, 63
        %s283 = scalar_select %p282, %s281, 63
        %s284 = smul.addr %s283, 8
        %s285 = scalar_lea.vmem %s5, %s284
        %s286 = smul.u32 32, %s23
        %p288 = scmp.eq.s32.totalorder %s24, 0
        // Predicated region
        $region45: #{tpu_custom_call.1} parent=39 // pred_check
          %p289 = pneg %p288
        $region46: #{tpu_custom_call.1} parent=39 // pred_check_branch
          %291 = sbr.rel (%p289) target = $region48
        $region47: #{tpu_custom_call.1} parent=39 // pred_region
          %vm292 = vcmask 261120
          %293 = vst.msk [vmem:[#allocation2] sm:$0xff] %vm292, 0.0
          %294 = vst.msk [vmem:[#allocation2 + $0x8] sm:$0xff] %vm292, 0.0
          %295 = vst.msk [vmem:[#allocation2 + $0x10] sm:$0xff] %vm292, 0.0
          %296 = vst.msk [vmem:[#allocation2 + $0x18] sm:$0xff] %vm292, 0.0
          %297 = vst.msk [vmem:[#allocation2 + $0x20] sm:$0xff] %vm292, 0.0
          %298 = vst.msk [vmem:[#allocation2 + $0x28] sm:$0xff] %vm292, 0.0
          %299 = vst.msk [vmem:[#allocation2 + $0x30] sm:$0xff] %vm292, 0.0
          %300 = vst.msk [vmem:[#allocation2 + $0x38] sm:$0xff] %vm292, 0.0
          %301 = vst.msk [vmem:[#allocation2 + $0x40] sm:$0xff] %vm292, 0.0
          %302 = vst.msk [vmem:[#allocation2 + $0x48] sm:$0xff] %vm292, 0.0
          %303 = vst.msk [vmem:[#allocation2 + $0x50] sm:$0xff] %vm292, 0.0
          %304 = vst.msk [vmem:[#allocation2 + $0x58] sm:$0xff] %vm292, 0.0
          %305 = vst.msk [vmem:[#allocation2 + $0x60] sm:$0xff] %vm292, 0.0
          %306 = vst.msk [vmem:[#allocation2 + $0x68] sm:$0xff] %vm292, 0.0
          %307 = vst.msk [vmem:[#allocation2 + $0x70] sm:$0xff] %vm292, 0.0
          %308 = vst.msk [vmem:[#allocation2 + $0x78] sm:$0xff] %vm292, 0.0
          %309 = vst.msk [vmem:[#allocation2 + $0x80] sm:$0xff] %vm292, 0.0
          %310 = vst.msk [vmem:[#allocation2 + $0x88] sm:$0xff] %vm292, 0.0
          %311 = vst.msk [vmem:[#allocation2 + $0x90] sm:$0xff] %vm292, 0.0
          %312 = vst.msk [vmem:[#allocation2 + $0x98] sm:$0xff] %vm292, 0.0
          %313 = vst.msk [vmem:[#allocation2 + $0xa0] sm:$0xff] %vm292, 0.0
          %314 = vst.msk [vmem:[#allocation2 + $0xa8] sm:$0xff] %vm292, 0.0
          %315 = vst.msk [vmem:[#allocation2 + $0xb0] sm:$0xff] %vm292, 0.0
          %316 = vst.msk [vmem:[#allocation2 + $0xb8] sm:$0xff] %vm292, 0.0
          %317 = vst.msk [vmem:[#allocation2 + $0xc0] sm:$0xff] %vm292, 0.0
          %318 = vst.msk [vmem:[#allocation2 + $0xc8] sm:$0xff] %vm292, 0.0
          %319 = vst.msk [vmem:[#allocation2 + $0xd0] sm:$0xff] %vm292, 0.0
          %320 = vst.msk [vmem:[#allocation2 + $0xd8] sm:$0xff] %vm292, 0.0
          %321 = vst.msk [vmem:[#allocation2 + $0xe0] sm:$0xff] %vm292, 0.0
          %322 = vst.msk [vmem:[#allocation2 + $0xe8] sm:$0xff] %vm292, 0.0
          %323 = vst.msk [vmem:[#allocation2 + $0xf0] sm:$0xff] %vm292, 0.0
          %324 = vst.msk [vmem:[#allocation2 + $0xf8] sm:$0xff] %vm292, 0.0
        $region48: #{tpu_custom_call.1} parent=39 // pred_fallthru
          _
        %v325 = vld [vmem:[%s2] sm:$0xff]
        %v326 = vld [vmem:[%s2 + $0x8] sm:$0xff]
        %v327 = vld [vmem:[%s2 + $0x10] sm:$0xff]
        %v328 = vld [vmem:[%s3] sm:$0xff]
        %v329 = vld [vmem:[%s3 + $0x8] sm:$0xff]
        %v330 = vld [vmem:[%s3 + $0x10] sm:$0xff]
        %v331 = vld [vmem:[%s3 + $0x18] sm:$0xff]
        %vm332 = vcmask 261120
        %v334 = vsel %vm332, %v325, 0
        %v337 = vsel %vm332, %v326, 0
        %v340 = vsel %vm332, %v327, 0
        %342 = vmatprep.subr.mxu0 0.0
        %343 = vmatpush1.msra.mxu0 %v328
        %344 = vmatprep.subr.mxu0 0.0
        %345 = vmatpush1.msra.mxu0 %v329
        %346 = vmatprep.subr.mxu0 0.0
        %347 = vmatpush1.msra.mxu0 %v330
        %348 = vmatprep.subr.mxu0 0.0
        %349 = vmatpush1.msra.mxu0 %v331
        %350 = vmatprep.subr.mxu0 0.0
        %351 = vmatpush1.msra.mxu0 0.0
        %352 = vmatprep.subr.mxu0 0.0
        %353 = vmatpush1.msra.mxu0 0.0
        %354 = vmatprep.subr.mxu0 0.0
        %355 = vmatpush1.msra.mxu0 0.0
        %356 = vmatprep.subr.mxu0 0.0
        %357 = vmatpush1.msra.mxu0 0.0
        %358 = vmatprep.subr.mxu0 0.0
        %359 = vmatpush1.msra.mxu0 0.0
        %360 = vmatprep.subr.mxu0 0.0
        %361 = vmatpush1.msra.mxu0 0.0
        %362 = vmatprep.subr.mxu0 0.0
        %363 = vmatpush1.msra.mxu0 0.0
        %364 = vmatprep.subr.mxu0 0.0
        %365 = vmatpush1.msra.mxu0 0.0
        %366 = vmatprep.subr.mxu0 0.0
        %367 = vmatpush1.msra.mxu0 0.0
        %368 = vmatprep.subr.mxu0 0.0
        %369 = vmatpush1.msra.mxu0 0.0
        %370 = vmatprep.subr.mxu0 0.0
        %371 = vmatpush1.msra.mxu0 0.0
        %372 = vmatprep.subr.mxu0 0.0
        %373 = vmatpush1.msra.mxu0 0.0
        %374 = vmatprep.subr.mxu0 0.0
        %375 = vmatpush1.msra.mxu0 0.0
        %376 = vmatprep.subr.mxu0 0.0
        %377 = vmatpush1.msra.mxu0 0.0
        %378 = vmatprep.subr.mxu0 0.0
        %379 = vmatpush1.msra.mxu0 0.0
        %380 = vmatprep.subr.mxu0 0.0
        %381 = vmatpush1.msra.mxu0 0.0
        %382 = vmatprep.subr.mxu0 0.0
        %383 = vmatpush1.msra.mxu0 0.0
        %384 = vmatprep.subr.mxu0 0.0
        %385 = vmatpush1.msra.mxu0 0.0
        %386 = vmatprep.subr.mxu0 0.0
        %387 = vmatpush1.msra.mxu0 0.0
        %388 = vmatprep.subr.mxu0 0.0
        %389 = vmatpush1.msra.mxu0 0.0
        %390 = vmatprep.subr.mxu0 0.0
        %391 = vmatpush1.msra.mxu0 0.0
        %392 = vmatprep.subr.mxu0 0.0
        %393 = vmatpush1.msra.mxu0 0.0
        %394 = vmatprep.subr.mxu0 0.0
        %395 = vmatpush1.msra.mxu0 0.0
        %396 = vmatprep.subr.mxu0 0.0
        %397 = vmatpush1.msra.mxu0 0.0
        %398 = vmatprep.subr.mxu0 0.0
        %399 = vmatpush1.msra.mxu0 0.0
        %400 = vmatprep.subr.mxu0 0.0
        %401 = vmatpush1.msra.mxu0 0.0
        %402 = vmatprep.subr.mxu0 0.0
        %403 = vmatpush1.msra.mxu0 0.0
        %404 = vmatprep.subr.mxu0 0.0
        %405 = vmatpush1.msra.mxu0 0.0
        %406 = vmatprep.mubr.f32.mxu0 0.0
        %407 = vmatmul.mubr.f32.gmra.mrb[0].mxu0 %v334
        %v408 = vpop.f32.mrb[0].mxu0
        %v409 = vadd.f32 0.0, %v408
        %v410 = vpop.f32.mrb[0].mxu0
        %411 = vmatprep.mubr.f32.mxu0 0.0
        %412 = vmatmul.mubr.f32.gmra.mrb[0].mxu0 %v337
        %v413 = vpop.f32.mrb[0].mxu0
        %v414 = vadd.f32 0.0, %v413
        %v415 = vpop.f32.mrb[0].mxu0
        %416 = vmatprep.mubr.f32.mxu0 0.0
        %417 = vmatmul.mubr.f32.gmra.mrb[0].mxu0 %v340
        %v418 = vpop.f32.mrb[0].mxu0
        %v419 = vadd.f32 0.0, %v418
        %v420 = vpop.f32.mrb[0].mxu0
        %421 = vdwg.mxu0
        %v422 = vld [vmem:[%s279] sm:$0xff]
        %v423 = vld [vmem:[%s279 + $0x8] sm:$0xff]
        %v424 = vld [vmem:[%s279 + $0x10] sm:$0xff]
        %v425 = vld [vmem:[%s279 + $0x18] sm:$0xff]
        %v426 = vld [vmem:[%s279 + $0x20] sm:$0xff]
        %v427 = vld [vmem:[%s279 + $0x28] sm:$0xff]
        %v428 = vld [vmem:[%s279 + $0x30] sm:$0xff]
        %v429 = vld [vmem:[%s279 + $0x38] sm:$0xff]
        %v430 = vld [vmem:[%s279 + $0x40] sm:$0xff]
        %v431 = vld [vmem:[%s279 + $0x48] sm:$0xff]
        %v432 = vld [vmem:[%s279 + $0x50] sm:$0xff]
        %v433 = vld [vmem:[%s279 + $0x58] sm:$0xff]
        %v434 = vld [vmem:[%s279 + $0x60] sm:$0xff]
        %v435 = vld [vmem:[%s279 + $0x68] sm:$0xff]
        %v436 = vld [vmem:[%s279 + $0x70] sm:$0xff]
        %v437 = vld [vmem:[%s279 + $0x78] sm:$0xff]
        %v438 = vld [vmem:[%s279 + $0x80] sm:$0xff]
        %v439 = vld [vmem:[%s279 + $0x88] sm:$0xff]
        %v440 = vld [vmem:[%s279 + $0x90] sm:$0xff]
        %v441 = vld [vmem:[%s279 + $0x98] sm:$0xff]
        %v442 = vld [vmem:[%s279 + $0xa0] sm:$0xff]
        %v443 = vld [vmem:[%s279 + $0xa8] sm:$0xff]
        %v444 = vld [vmem:[%s279 + $0xb0] sm:$0xff]
        %v445 = vld [vmem:[%s279 + $0xb8] sm:$0xff]
        %v446 = vld [vmem:[%s279 + $0xc0] sm:$0xff]
        %v447 = vld [vmem:[%s279 + $0xc8] sm:$0xff]
        %v448 = vld [vmem:[%s279 + $0xd0] sm:$0xff]
        %v449 = vld [vmem:[%s279 + $0xd8] sm:$0xff]
        %v450 = vld [vmem:[%s279 + $0xe0] sm:$0xff]
        %v451 = vld [vmem:[%s279 + $0xe8] sm:$0xff]
        %v452 = vld [vmem:[%s279 + $0xf0] sm:$0xff]
        %v453 = vld [vmem:[%s279 + $0xf8] sm:$0xff]
        %vm454 = vcmask 195584
        %v456 = vsel %vm454, %v422, 0
        %v459 = vsel %vm454, %v423, 0
        %v462 = vsel %vm454, %v424, 0
        %v465 = vsel %vm454, %v425, 0
        %v468 = vsel %vm454, %v426, 0
        %v471 = vsel %vm454, %v427, 0
        %v474 = vsel %vm454, %v428, 0
        %v477 = vsel %vm454, %v429, 0
        %v480 = vsel %vm454, %v430, 0
        %v483 = vsel %vm454, %v431, 0
        %v486 = vsel %vm454, %v432, 0
        %v489 = vsel %vm454, %v433, 0
        %v492 = vsel %vm454, %v434, 0
        %v495 = vsel %vm454, %v435, 0
        %v498 = vsel %vm454, %v436, 0
        %v501 = vsel %vm454, %v437, 0
        %v504 = vsel %vm454, %v438, 0
        %v507 = vsel %vm454, %v439, 0
        %v510 = vsel %vm454, %v440, 0
        %v513 = vsel %vm454, %v441, 0
        %v516 = vsel %vm454, %v442, 0
        %v519 = vsel %vm454, %v443, 0
        %v522 = vsel %vm454, %v444, 0
        %v525 = vsel %vm454, %v445, 0
        %v528 = vsel %vm454, %v446, 0
        %v531 = vsel %vm454, %v447, 0
        %v534 = vsel %vm454, %v448, 0
        %v537 = vsel %vm454, %v449, 0
        %v540 = vsel %vm454, %v450, 0
        %v543 = vsel %vm454, %v451, 0
        %v546 = vsel %vm454, %v452, 0
        %v549 = vsel %vm454, %v453, 0
        %551 = vmatprep.subr.mxu0 0.0
        %552 = vmatpush1.msra.mxu0 %v409
        %553 = vmatprep.subr.mxu0 0.0
        %554 = vmatpush1.msra.mxu0 %v414
        %555 = vmatprep.subr.mxu0 0.0
        %556 = vmatpush1.msra.mxu0 %v419
        %557 = vmatprep.subr.mxu0 0.0
        %558 = vmatpush1.msra.mxu0 0.0
        %559 = vmatprep.subr.mxu0 0.0
        %560 = vmatpush1.msra.mxu0 0.0
        %561 = vmatprep.subr.mxu0 0.0
        %562 = vmatpush1.msra.mxu0 0.0
        %563 = vmatprep.subr.mxu0 0.0
        %564 = vmatpush1.msra.mxu0 0.0
        %565 = vmatprep.subr.mxu0 0.0
        %566 = vmatpush1.msra.mxu0 0.0
        %567 = vmatprep.subr.mxu0 0.0
        %568 = vmatpush1.msra.mxu0 0.0
        %569 = vmatprep.subr.mxu0 0.0
        %570 = vmatpush1.msra.mxu0 0.0
        %571 = vmatprep.subr.mxu0 0.0
        %572 = vmatpush1.msra.mxu0 0.0
        %573 = vmatprep.subr.mxu0 0.0
        %574 = vmatpush1.msra.mxu0 0.0
        %575 = vmatprep.subr.mxu0 0.0
        %576 = vmatpush1.msra.mxu0 0.0
        %577 = vmatprep.subr.mxu0 0.0
        %578 = vmatpush1.msra.mxu0 0.0
        %579 = vmatprep.subr.mxu0 0.0
        %580 = vmatpush1.msra.mxu0 0.0
        %581 = vmatprep.subr.mxu0 0.0
        %582 = vmatpush1.msra.mxu0 0.0
        %583 = vmatprep.subr.mxu0 0.0
        %584 = vmatpush1.msra.mxu0 0.0
        %585 = vmatprep.subr.mxu0 0.0
        %586 = vmatpush1.msra.mxu0 0.0
        %587 = vmatprep.subr.mxu0 0.0
        %588 = vmatpush1.msra.mxu0 0.0
        %589 = vmatprep.subr.mxu0 0.0
        %590 = vmatpush1.msra.mxu0 0.0
        %591 = vmatprep.subr.mxu0 0.0
        %592 = vmatpush1.msra.mxu0 0.0
        %593 = vmatprep.subr.mxu0 0.0
        %594 = vmatpush1.msra.mxu0 0.0
        %595 = vmatprep.subr.mxu0 0.0
        %596 = vmatpush1.msra.mxu0 0.0
        %597 = vmatprep.subr.mxu0 0.0
        %598 = vmatpush1.msra.mxu0 0.0
        %599 = vmatprep.subr.mxu0 0.0
        %600 = vmatpush1.msra.mxu0 0.0
        %601 = vmatprep.subr.mxu0 0.0
        %602 = vmatpush1.msra.mxu0 0.0
        %603 = vmatprep.subr.mxu0 0.0
        %604 = vmatpush1.msra.mxu0 0.0
        %605 = vmatprep.subr.mxu0 0.0
        %606 = vmatpush1.msra.mxu0 0.0
        %607 = vmatprep.subr.mxu0 0.0
        %608 = vmatpush1.msra.mxu0 0.0
        %609 = vmatprep.subr.mxu0 0.0
        %610 = vmatpush1.msra.mxu0 0.0
        %611 = vmatprep.subr.mxu0 0.0
        %612 = vmatpush1.msra.mxu0 0.0
        %613 = vmatprep.subr.mxu0 0.0
        %614 = vmatpush1.msra.mxu0 0.0
        %615 = vmatprep.mubr.f32.mxu0 0.0
        %616 = vmatmul.mubr.f32.gmra.mrb[0].mxu0 %v456
        %v617 = vpop.f32.mrb[0].mxu0
        %v618 = vadd.f32 0.0, %v617
        %v619 = vpop.f32.mrb[0].mxu0
        %620 = vmatprep.mubr.f32.mxu0 0.0
        %621 = vmatmul.mubr.f32.gmra.mrb[0].mxu0 %v459
        %v622 = vpop.f32.mrb[0].mxu0
        %v623 = vadd.f32 0.0, %v622
        %v624 = vpop.f32.mrb[0].mxu0
        %625 = vmatprep.mubr.f32.mxu0 0.0
        %626 = vmatmul.mubr.f32.gmra.mrb[0].mxu0 %v462
        %v627 = vpop.f32.mrb[0].mxu0
        %v628 = vadd.f32 0.0, %v627
        %v629 = vpop.f32.mrb[0].mxu0
        %630 = vmatprep.mubr.f32.mxu0 0.0
        %631 = vmatmul.mubr.f32.gmra.mrb[0].mxu0 %v465
        %v632 = vpop.f32.mrb[0].mxu0
        %v633 = vadd.f32 0.0, %v632
        %v634 = vpop.f32.mrb[0].mxu0
        %635 = vmatprep.mubr.f32.mxu0 0.0
        %636 = vmatmul.mubr.f32.gmra.mrb[0].mxu0 %v468
        %v637 = vpop.f32.mrb[0].mxu0
        %v638 = vadd.f32 0.0, %v637
        %v639 = vpop.f32.mrb[0].mxu0
        %640 = vmatprep.mubr.f32.mxu0 0.0
        %641 = vmatmul.mubr.f32.gmra.mrb[0].mxu0 %v471
        %v642 = vpop.f32.mrb[0].mxu0
        %v643 = vadd.f32 0.0, %v642
        %v644 = vpop.f32.mrb[0].mxu0
        %645 = vmatprep.mubr.f32.mxu0 0.0
        %646 = vmatmul.mubr.f32.gmra.mrb[0].mxu0 %v474
        %v647 = vpop.f32.mrb[0].mxu0
        %v648 = vadd.f32 0.0, %v647
        %v649 = vpop.f32.mrb[0].mxu0
        %650 = vmatprep.mubr.f32.mxu0 0.0
        %651 = vmatmul.mubr.f32.gmra.mrb[0].mxu0 %v477
        %v652 = vpop.f32.mrb[0].mxu0
        %v653 = vadd.f32 0.0, %v652
        %v654 = vpop.f32.mrb[0].mxu0
        %655 = vmatprep.mubr.f32.mxu0 0.0
        %656 = vmatmul.mubr.f32.gmra.mrb[0].mxu0 %v480
        %v657 = vpop.f32.mrb[0].mxu0
        %v658 = vadd.f32 0.0, %v657
        %v659 = vpop.f32.mrb[0].mxu0
        %660 = vmatprep.mubr.f32.mxu0 0.0
        %661 = vmatmul.mubr.f32.gmra.mrb[0].mxu0 %v483
        %v662 = vpop.f32.mrb[0].mxu0
        %v663 = vadd.f32 0.0, %v662
        %v664 = vpop.f32.mrb[0].mxu0
        %665 = vmatprep.mubr.f32.mxu0 0.0
        %666 = vmatmul.mubr.f32.gmra.mrb[0].mxu0 %v486
        %v667 = vpop.f32.mrb[0].mxu0
        %v668 = vadd.f32 0.0, %v667
        %v669 = vpop.f32.mrb[0].mxu0
        %670 = vmatprep.mubr.f32.mxu0 0.0
        %671 = vmatmul.mubr.f32.gmra.mrb[0].mxu0 %v489
        %v672 = vpop.f32.mrb[0].mxu0
        %v673 = vadd.f32 0.0, %v672
        %v674 = vpop.f32.mrb[0].mxu0
        %675 = vmatprep.mubr.f32.mxu0 0.0
        %676 = vmatmul.mubr.f32.gmra.mrb[0].mxu0 %v492
        %v677 = vpop.f32.mrb[0].mxu0
        %v678 = vadd.f32 0.0, %v677
        %v679 = vpop.f32.mrb[0].mxu0
        %680 = vmatprep.mubr.f32.mxu0 0.0
        %681 = vmatmul.mubr.f32.gmra.mrb[0].mxu0 %v495
        %v682 = vpop.f32.mrb[0].mxu0
        %v683 = vadd.f32 0.0, %v682
        %v684 = vpop.f32.mrb[0].mxu0
        %685 = vmatprep.mubr.f32.mxu0 0.0
        %686 = vmatmul.mubr.f32.gmra.mrb[0].mxu0 %v498
        %v687 = vpop.f32.mrb[0].mxu0
        %v688 = vadd.f32 0.0, %v687
        %v689 = vpop.f32.mrb[0].mxu0
        %690 = vmatprep.mubr.f32.mxu0 0.0
        %691 = vmatmul.mubr.f32.gmra.mrb[0].mxu0 %v501
        %v692 = vpop.f32.mrb[0].mxu0
        %v693 = vadd.f32 0.0, %v692
        %v694 = vpop.f32.mrb[0].mxu0
        %695 = vmatprep.mubr.f32.mxu0 0.0
        %696 = vmatmul.mubr.f32.gmra.mrb[0].mxu0 %v504
        %v697 = vpop.f32.mrb[0].mxu0
        %v698 = vadd.f32 0.0, %v697
        %v699 = vpop.f32.mrb[0].mxu0
        %700 = vmatprep.mubr.f32.mxu0 0.0
        %701 = vmatmul.mubr.f32.gmra.mrb[0].mxu0 %v507
        %v702 = vpop.f32.mrb[0].mxu0
        %v703 = vadd.f32 0.0, %v702
        %v704 = vpop.f32.mrb[0].mxu0
        %705 = vmatprep.mubr.f32.mxu0 0.0
        %706 = vmatmul.mubr.f32.gmra.mrb[0].mxu0 %v510
        %v707 = vpop.f32.mrb[0].mxu0
        %v708 = vadd.f32 0.0, %v707
        %v709 = vpop.f32.mrb[0].mxu0
        %710 = vmatprep.mubr.f32.mxu0 0.0
        %711 = vmatmul.mubr.f32.gmra.mrb[0].mxu0 %v513
        %v712 = vpop.f32.mrb[0].mxu0
        %v713 = vadd.f32 0.0, %v712
        %v714 = vpop.f32.mrb[0].mxu0
        %715 = vmatprep.mubr.f32.mxu0 0.0
        %716 = vmatmul.mubr.f32.gmra.mrb[0].mxu0 %v516
        %v717 = vpop.f32.mrb[0].mxu0
        %v718 = vadd.f32 0.0, %v717
        %v719 = vpop.f32.mrb[0].mxu0
        %720 = vmatprep.mubr.f32.mxu0 0.0
        %721 = vmatmul.mubr.f32.gmra.mrb[0].mxu0 %v519
        %v722 = vpop.f32.mrb[0].mxu0
        %v723 = vadd.f32 0.0, %v722
        %v724 = vpop.f32.mrb[0].mxu0
        %725 = vmatprep.mubr.f32.mxu0 0.0
        %726 = vmatmul.mubr.f32.gmra.mrb[0].mxu0 %v522
        %v727 = vpop.f32.mrb[0].mxu0
        %v728 = vadd.f32 0.0, %v727
        %v729 = vpop.f32.mrb[0].mxu0
        %730 = vmatprep.mubr.f32.mxu0 0.0
        %731 = vmatmul.mubr.f32.gmra.mrb[0].mxu0 %v525
        %v732 = vpop.f32.mrb[0].mxu0
        %v733 = vadd.f32 0.0, %v732
        %v734 = vpop.f32.mrb[0].mxu0
        %735 = vmatprep.mubr.f32.mxu0 0.0
        %736 = vmatmul.mubr.f32.gmra.mrb[0].mxu0 %v528
        %v737 = vpop.f32.mrb[0].mxu0
        %v738 = vadd.f32 0.0, %v737
        %v739 = vpop.f32.mrb[0].mxu0
        %740 = vmatprep.mubr.f32.mxu0 0.0
        %741 = vmatmul.mubr.f32.gmra.mrb[0].mxu0 %v531
        %v742 = vpop.f32.mrb[0].mxu0
        %v743 = vadd.f32 0.0, %v742
        %v744 = vpop.f32.mrb[0].mxu0
        %745 = vmatprep.mubr.f32.mxu0 0.0
        %746 = vmatmul.mubr.f32.gmra.mrb[0].mxu0 %v534
        %v747 = vpop.f32.mrb[0].mxu0
        %v748 = vadd.f32 0.0, %v747
        %v749 = vpop.f32.mrb[0].mxu0
        %750 = vmatprep.mubr.f32.mxu0 0.0
        %751 = vmatmul.mubr.f32.gmra.mrb[0].mxu0 %v537
        %v752 = vpop.f32.mrb[0].mxu0
        %v753 = vadd.f32 0.0, %v752
        %v754 = vpop.f32.mrb[0].mxu0
        %755 = vmatprep.mubr.f32.mxu0 0.0
        %756 = vmatmul.mubr.f32.gmra.mrb[0].mxu0 %v540
        %v757 = vpop.f32.mrb[0].mxu0
        %v758 = vadd.f32 0.0, %v757
        %v759 = vpop.f32.mrb[0].mxu0
        %760 = vmatprep.mubr.f32.mxu0 0.0
        %761 = vmatmul.mubr.f32.gmra.mrb[0].mxu0 %v543
        %v762 = vpop.f32.mrb[0].mxu0
        %v763 = vadd.f32 0.0, %v762
        %v764 = vpop.f32.mrb[0].mxu0
        %765 = vmatprep.mubr.f32.mxu0 0.0
        %766 = vmatmul.mubr.f32.gmra.mrb[0].mxu0 %v546
        %v767 = vpop.f32.mrb[0].mxu0
        %v768 = vadd.f32 0.0, %v767
        %v769 = vpop.f32.mrb[0].mxu0
        %770 = vmatprep.mubr.f32.mxu0 0.0
        %771 = vmatmul.mubr.f32.gmra.mrb[0].mxu0 %v549
        %v772 = vpop.f32.mrb[0].mxu0
        %v773 = vadd.f32 0.0, %v772
        %v774 = vpop.f32.mrb[0].mxu0
        %775 = vdwg.mxu0
        %v776 = vld [vmem:[#allocation2] sm:$0xff]
        %v777 = vld [vmem:[#allocation2 + $0x8] sm:$0xff]
        %v778 = vld [vmem:[#allocation2 + $0x10] sm:$0xff]
        %v779 = vld [vmem:[#allocation2 + $0x18] sm:$0xff]
        %v780 = vld [vmem:[#allocation2 + $0x20] sm:$0xff]
        %v781 = vld [vmem:[#allocation2 + $0x28] sm:$0xff]
        %v782 = vld [vmem:[#allocation2 + $0x30] sm:$0xff]
        %v783 = vld [vmem:[#allocation2 + $0x38] sm:$0xff]
        %v784 = vld [vmem:[#allocation2 + $0x40] sm:$0xff]
        %v785 = vld [vmem:[#allocation2 + $0x48] sm:$0xff]
        %v786 = vld [vmem:[#allocation2 + $0x50] sm:$0xff]
        %v787 = vld [vmem:[#allocation2 + $0x58] sm:$0xff]
        %v788 = vld [vmem:[#allocation2 + $0x60] sm:$0xff]
        %v789 = vld [vmem:[#allocation2 + $0x68] sm:$0xff]
        %v790 = vld [vmem:[#allocation2 + $0x70] sm:$0xff]
        %v791 = vld [vmem:[#allocation2 + $0x78] sm:$0xff]
        %v792 = vld [vmem:[#allocation2 + $0x80] sm:$0xff]
        %v793 = vld [vmem:[#allocation2 + $0x88] sm:$0xff]
        %v794 = vld [vmem:[#allocation2 + $0x90] sm:$0xff]
        %v795 = vld [vmem:[#allocation2 + $0x98] sm:$0xff]
        %v796 = vld [vmem:[#allocation2 + $0xa0] sm:$0xff]
        %v797 = vld [vmem:[#allocation2 + $0xa8] sm:$0xff]
        %v798 = vld [vmem:[#allocation2 + $0xb0] sm:$0xff]
        %v799 = vld [vmem:[#allocation2 + $0xb8] sm:$0xff]
        %v800 = vld [vmem:[#allocation2 + $0xc0] sm:$0xff]
        %v801 = vld [vmem:[#allocation2 + $0xc8] sm:$0xff]
        %v802 = vld [vmem:[#allocation2 + $0xd0] sm:$0xff]
        %v803 = vld [vmem:[#allocation2 + $0xd8] sm:$0xff]
        %v804 = vld [vmem:[#allocation2 + $0xe0] sm:$0xff]
        %v805 = vld [vmem:[#allocation2 + $0xe8] sm:$0xff]
        %v806 = vld [vmem:[#allocation2 + $0xf0] sm:$0xff]
        %v807 = vld [vmem:[#allocation2 + $0xf8] sm:$0xff]
        %v808 = vld [vmem:[%s241] sm:$0xff]
        %v809 = vld [vmem:[%s241 + $0x8] sm:$0xff]
        %v810 = vld [vmem:[%s241 + $0x10] sm:$0xff]
        %v811 = vld [vmem:[%s241 + $0x18] sm:$0xff]
        %v812 = vld [vmem:[%s241 + $0x20] sm:$0xff]
        %v813 = vld [vmem:[%s241 + $0x28] sm:$0xff]
        %v814 = vld [vmem:[%s241 + $0x30] sm:$0xff]
        %v815 = vld [vmem:[%s241 + $0x38] sm:$0xff]
        %v816 = vld [vmem:[%s241 + $0x40] sm:$0xff]
        %v817 = vld [vmem:[%s241 + $0x48] sm:$0xff]
        %v818 = vld [vmem:[%s241 + $0x50] sm:$0xff]
        %v819 = vld [vmem:[%s241 + $0x58] sm:$0xff]
        %v820 = vld [vmem:[%s241 + $0x60] sm:$0xff]
        %v821 = vld [vmem:[%s241 + $0x68] sm:$0xff]
        %v822 = vld [vmem:[%s241 + $0x70] sm:$0xff]
        %v823 = vld [vmem:[%s241 + $0x78] sm:$0xff]
        %v824 = vld [vmem:[%s241 + $0x80] sm:$0xff]
        %v825 = vld [vmem:[%s241 + $0x88] sm:$0xff]
        %v826 = vld [vmem:[%s241 + $0x90] sm:$0xff]
        %v827 = vld [vmem:[%s241 + $0x98] sm:$0xff]
        %v828 = vld [vmem:[%s241 + $0xa0] sm:$0xff]
        %v829 = vld [vmem:[%s241 + $0xa8] sm:$0xff]
        %v830 = vld [vmem:[%s241 + $0xb0] sm:$0xff]
        %v831 = vld [vmem:[%s241 + $0xb8] sm:$0xff]
        %v832 = vld [vmem:[%s241 + $0xc0] sm:$0xff]
        %v833 = vld [vmem:[%s241 + $0xc8] sm:$0xff]
        %v834 = vld [vmem:[%s241 + $0xd0] sm:$0xff]
        %v835 = vld [vmem:[%s241 + $0xd8] sm:$0xff]
        %v836 = vld [vmem:[%s241 + $0xe0] sm:$0xff]
        %v837 = vld [vmem:[%s241 + $0xe8] sm:$0xff]
        %v838 = vld [vmem:[%s241 + $0xf0] sm:$0xff]
        %v839 = vld [vmem:[%s241 + $0xf8] sm:$0xff]
        %v840 = vpack.c.bf16 %v623, %v618
        %v841 = vpack.c.bf16 %v633, %v628
        %v842 = vpack.c.bf16 %v643, %v638
        %v843 = vpack.c.bf16 %v653, %v648
        %v844 = vpack.c.bf16 %v663, %v658
        %v845 = vpack.c.bf16 %v673, %v668
        %v846 = vpack.c.bf16 %v683, %v678
        %v847 = vpack.c.bf16 %v693, %v688
        %v848 = vpack.c.bf16 %v703, %v698
        %v849 = vpack.c.bf16 %v713, %v708
        %v850 = vpack.c.bf16 %v723, %v718
        %v851 = vpack.c.bf16 %v733, %v728
        %v852 = vpack.c.bf16 %v743, %v738
        %v853 = vpack.c.bf16 %v753, %v748
        %v854 = vpack.c.bf16 %v763, %v758
        %v855 = vpack.c.bf16 %v773, %v768
        %v888 = vunpack.c.l.b16 %v808
        %v889 = vunpack.c.h.b16 %v808
        %v890 = vunpack.c.l.b16 %v809
        %v891 = vunpack.c.h.b16 %v809
        %v892 = vunpack.c.l.b16 %v810
        %v893 = vunpack.c.h.b16 %v810
        %v894 = vunpack.c.l.b16 %v811
        %v895 = vunpack.c.h.b16 %v811
        %v896 = vunpack.c.l.b16 %v812
        %v897 = vunpack.c.h.b16 %v812
        %v898 = vunpack.c.l.b16 %v813
        %v899 = vunpack.c.h.b16 %v813
        %v900 = vunpack.c.l.b16 %v814
        %v901 = vunpack.c.h.b16 %v814
        %v902 = vunpack.c.l.b16 %v815
        %v903 = vunpack.c.h.b16 %v815
        %v904 = vunpack.c.l.b16 %v816
        %v905 = vunpack.c.h.b16 %v816
        %v906 = vunpack.c.l.b16 %v817
        %v907 = vunpack.c.h.b16 %v817
        %v908 = vunpack.c.l.b16 %v818
        %v909 = vunpack.c.h.b16 %v818
        %v910 = vunpack.c.l.b16 %v819
        %v911 = vunpack.c.h.b16 %v819
        %v912 = vunpack.c.l.b16 %v820
        %v913 = vunpack.c.h.b16 %v820
        %v914 = vunpack.c.l.b16 %v821
        %v915 = vunpack.c.h.b16 %v821
        %v916 = vunpack.c.l.b16 %v822
        %v917 = vunpack.c.h.b16 %v822
        %v918 = vunpack.c.l.b16 %v823
        %v919 = vunpack.c.h.b16 %v823
        %v920 = vunpack.c.l.b16 %v824
        %v921 = vunpack.c.h.b16 %v824
        %v922 = vunpack.c.l.b16 %v825
        %v923 = vunpack.c.h.b16 %v825
        %v924 = vunpack.c.l.b16 %v826
        %v925 = vunpack.c.h.b16 %v826
        %v926 = vunpack.c.l.b16 %v827
        %v927 = vunpack.c.h.b16 %v827
        %v928 = vunpack.c.l.b16 %v828
        %v929 = vunpack.c.h.b16 %v828
        %v930 = vunpack.c.l.b16 %v829
        %v931 = vunpack.c.h.b16 %v829
        %v932 = vunpack.c.l.b16 %v830
        %v933 = vunpack.c.h.b16 %v830
        %v934 = vunpack.c.l.b16 %v831
        %v935 = vunpack.c.h.b16 %v831
        %v936 = vunpack.c.l.b16 %v832
        %v937 = vunpack.c.h.b16 %v832
        %v938 = vunpack.c.l.b16 %v833
        %v939 = vunpack.c.h.b16 %v833
        %v940 = vunpack.c.l.b16 %v834
        %v941 = vunpack.c.h.b16 %v834
        %v942 = vunpack.c.l.b16 %v835
        %v943 = vunpack.c.h.b16 %v835
        %v944 = vunpack.c.l.b16 %v836
        %v945 = vunpack.c.h.b16 %v836
        %v946 = vunpack.c.l.b16 %v837
        %v947 = vunpack.c.h.b16 %v837
        %v948 = vunpack.c.l.b16 %v838
        %v949 = vunpack.c.h.b16 %v838
        %v950 = vunpack.c.l.b16 %v839
        %v951 = vunpack.c.h.b16 %v839
        %v952 = vpack.c.b16 %v890, %v888
        %v953 = vpack.c.b16 %v891, %v889
        %v954 = vpack.c.b16 %v894, %v892
        %v955 = vpack.c.b16 %v895, %v893
        %v956 = vpack.c.b16 %v898, %v896
        %v957 = vpack.c.b16 %v899, %v897
        %v958 = vpack.c.b16 %v902, %v900
        %v959 = vpack.c.b16 %v903, %v901
        %v960 = vpack.c.b16 %v906, %v904
        %v961 = vpack.c.b16 %v907, %v905
        %v962 = vpack.c.b16 %v910, %v908
        %v963 = vpack.c.b16 %v911, %v909
        %v964 = vpack.c.b16 %v914, %v912
        %v965 = vpack.c.b16 %v915, %v913
        %v966 = vpack.c.b16 %v918, %v916
        %v967 = vpack.c.b16 %v919, %v917
        %v968 = vpack.c.b16 %v922, %v920
        %v969 = vpack.c.b16 %v923, %v921
        %v970 = vpack.c.b16 %v926, %v924
        %v971 = vpack.c.b16 %v927, %v925
        %v972 = vpack.c.b16 %v930, %v928
        %v973 = vpack.c.b16 %v931, %v929
        %v974 = vpack.c.b16 %v934, %v932
        %v975 = vpack.c.b16 %v935, %v933
        %v976 = vpack.c.b16 %v938, %v936
        %v977 = vpack.c.b16 %v939, %v937
        %v978 = vpack.c.b16 %v942, %v940
        %v979 = vpack.c.b16 %v943, %v941
        %v980 = vpack.c.b16 %v946, %v944
        %v981 = vpack.c.b16 %v947, %v945
        %v982 = vpack.c.b16 %v950, %v948
        %v983 = vpack.c.b16 %v951, %v949
        %1016 = vmatprep.subr.bf16.mxu0 0
        %1017 = vmatpush1.bf16.msra.mxu0 %v840
        %1018 = vmatprep.subr.bf16.mxu0 0
        %1019 = vmatpush1.bf16.msra.mxu0 %v841
        %1020 = vmatprep.subr.bf16.mxu0 0
        %1021 = vmatpush1.bf16.msra.mxu0 %v842
        %1022 = vmatprep.subr.bf16.mxu0 0
        %1023 = vmatpush1.bf16.msra.mxu0 %v843
        %1024 = vmatprep.subr.bf16.mxu0 0
        %1025 = vmatpush1.bf16.msra.mxu0 %v844
        %1026 = vmatprep.subr.bf16.mxu0 0
        %1027 = vmatpush1.bf16.msra.mxu0 %v845
        %1028 = vmatprep.subr.bf16.mxu0 0
        %1029 = vmatpush1.bf16.msra.mxu0 %v846
        %1030 = vmatprep.subr.bf16.mxu0 0
        %1031 = vmatpush1.bf16.msra.mxu0 %v847
        %1032 = vmatprep.subr.bf16.mxu0 0
        %1033 = vmatpush1.bf16.msra.mxu0 %v848
        %1034 = vmatprep.subr.bf16.mxu0 0
        %1035 = vmatpush1.bf16.msra.mxu0 %v849
        %1036 = vmatprep.subr.bf16.mxu0 0
        %1037 = vmatpush1.bf16.msra.mxu0 %v850
        %1038 = vmatprep.subr.bf16.mxu0 0
        %1039 = vmatpush1.bf16.msra.mxu0 %v851
        %1040 = vmatprep.subr.bf16.mxu0 0
        %1041 = vmatpush1.bf16.msra.mxu0 %v852
        %1042 = vmatprep.subr.bf16.mxu0 0
        %1043 = vmatpush1.bf16.msra.mxu0 %v853
        %1044 = vmatprep.subr.bf16.mxu0 0
        %1045 = vmatpush1.bf16.msra.mxu0 %v854
        %1046 = vmatprep.subr.bf16.mxu0 0
        %1047 = vmatpush1.bf16.msra.mxu0 %v855
        %1048 = vmatprep.mubr.bf16.mxu0 %v953
        %1049 = vmatmul.mubr.bf16.gmra.mrb[0].mxu0 %v952
        %v1050 = vpop.f32.mrb[0].mxu0
        %v1051 = vadd.f32 0.0, %v1050
        %v1052 = vpop.f32.mrb[0].mxu0
        %v1053 = vpop.f32.mrb[0].mxu0
        %v1054 = vadd.f32 0.0, %v1053
        %v1055 = vpop.f32.mrb[0].mxu0
        %1056 = vmatprep.mubr.bf16.mxu0 %v955
        %1057 = vmatmul.mubr.bf16.gmra.mrb[0].mxu0 %v954
        %v1058 = vpop.f32.mrb[0].mxu0
        %v1059 = vadd.f32 0.0, %v1058
        %v1060 = vpop.f32.mrb[0].mxu0
        %v1061 = vpop.f32.mrb[0].mxu0
        %v1062 = vadd.f32 0.0, %v1061
        %v1063 = vpop.f32.mrb[0].mxu0
        %1064 = vmatprep.mubr.bf16.mxu0 %v957
        %1065 = vmatmul.mubr.bf16.gmra.mrb[0].mxu0 %v956
        %v1066 = vpop.f32.mrb[0].mxu0
        %v1067 = vadd.f32 0.0, %v1066
        %v1068 = vpop.f32.mrb[0].mxu0
        %v1069 = vpop.f32.mrb[0].mxu0
        %v1070 = vadd.f32 0.0, %v1069
        %v1071 = vpop.f32.mrb[0].mxu0
        %1072 = vmatprep.mubr.bf16.mxu0 %v959
        %1073 = vmatmul.mubr.bf16.gmra.mrb[0].mxu0 %v958
        %v1074 = vpop.f32.mrb[0].mxu0
        %v1075 = vadd.f32 0.0, %v1074
        %v1076 = vpop.f32.mrb[0].mxu0
        %v1077 = vpop.f32.mrb[0].mxu0
        %v1078 = vadd.f32 0.0, %v1077
        %v1079 = vpop.f32.mrb[0].mxu0
        %1080 = vmatprep.mubr.bf16.mxu0 %v961
        %1081 = vmatmul.mubr.bf16.gmra.mrb[0].mxu0 %v960
        %v1082 = vpop.f32.mrb[0].mxu0
        %v1083 = vadd.f32 0.0, %v1082
        %v1084 = vpop.f32.mrb[0].mxu0
        %v1085 = vpop.f32.mrb[0].mxu0
        %v1086 = vadd.f32 0.0, %v1085
        %v1087 = vpop.f32.mrb[0].mxu0
        %1088 = vmatprep.mubr.bf16.mxu0 %v963
        %1089 = vmatmul.mubr.bf16.gmra.mrb[0].mxu0 %v962
        %v1090 = vpop.f32.mrb[0].mxu0
        %v1091 = vadd.f32 0.0, %v1090
        %v1092 = vpop.f32.mrb[0].mxu0
        %v1093 = vpop.f32.mrb[0].mxu0
        %v1094 = vadd.f32 0.0, %v1093
        %v1095 = vpop.f32.mrb[0].mxu0
        %1096 = vmatprep.mubr.bf16.mxu0 %v965
        %1097 = vmatmul.mubr.bf16.gmra.mrb[0].mxu0 %v964
        %v1098 = vpop.f32.mrb[0].mxu0
        %v1099 = vadd.f32 0.0, %v1098
        %v1100 = vpop.f32.mrb[0].mxu0
        %v1101 = vpop.f32.mrb[0].mxu0
        %v1102 = vadd.f32 0.0, %v1101
        %v1103 = vpop.f32.mrb[0].mxu0
        %1104 = vmatprep.mubr.bf16.mxu0 %v967
        %1105 = vmatmul.mubr.bf16.gmra.mrb[0].mxu0 %v966
        %v1106 = vpop.f32.mrb[0].mxu0
        %v1107 = vadd.f32 0.0, %v1106
        %v1108 = vpop.f32.mrb[0].mxu0
        %v1109 = vpop.f32.mrb[0].mxu0
        %v1110 = vadd.f32 0.0, %v1109
        %v1111 = vpop.f32.mrb[0].mxu0
        %1112 = vmatprep.mubr.bf16.mxu0 %v969
        %1113 = vmatmul.mubr.bf16.gmra.mrb[0].mxu0 %v968
        %v1114 = vpop.f32.mrb[0].mxu0
        %v1115 = vadd.f32 0.0, %v1114
        %v1116 = vpop.f32.mrb[0].mxu0
        %v1117 = vpop.f32.mrb[0].mxu0
        %v1118 = vadd.f32 0.0, %v1117
        %v1119 = vpop.f32.mrb[0].mxu0
        %1120 = vmatprep.mubr.bf16.mxu0 %v971
        %1121 = vmatmul.mubr.bf16.gmra.mrb[0].mxu0 %v970
        %v1122 = vpop.f32.mrb[0].mxu0
        %v1123 = vadd.f32 0.0, %v1122
        %v1124 = vpop.f32.mrb[0].mxu0
        %v1125 = vpop.f32.mrb[0].mxu0
        %v1126 = vadd.f32 0.0, %v1125
        %v1127 = vpop.f32.mrb[0].mxu0
        %1128 = vmatprep.mubr.bf16.mxu0 %v973
        %1129 = vmatmul.mubr.bf16.gmra.mrb[0].mxu0 %v972
        %v1130 = vpop.f32.mrb[0].mxu0
        %v1131 = vadd.f32 0.0, %v1130
        %v1132 = vpop.f32.mrb[0].mxu0
        %v1133 = vpop.f32.mrb[0].mxu0
        %v1134 = vadd.f32 0.0, %v1133
        %v1135 = vpop.f32.mrb[0].mxu0
        %1136 = vmatprep.mubr.bf16.mxu0 %v975
        %1137 = vmatmul.mubr.bf16.gmra.mrb[0].mxu0 %v974
        %v1138 = vpop.f32.mrb[0].mxu0
        %v1139 = vadd.f32 0.0, %v1138
        %v1140 = vpop.f32.mrb[0].mxu0
        %v1141 = vpop.f32.mrb[0].mxu0
        %v1142 = vadd.f32 0.0, %v1141
        %v1143 = vpop.f32.mrb[0].mxu0
        %1144 = vmatprep.mubr.bf16.mxu0 %v977
        %1145 = vmatmul.mubr.bf16.gmra.mrb[0].mxu0 %v976
        %v1146 = vpop.f32.mrb[0].mxu0
        %v1147 = vadd.f32 0.0, %v1146
        %v1148 = vpop.f32.mrb[0].mxu0
        %v1149 = vpop.f32.mrb[0].mxu0
        %v1150 = vadd.f32 0.0, %v1149
        %v1151 = vpop.f32.mrb[0].mxu0
        %1152 = vmatprep.mubr.bf16.mxu0 %v979
        %1153 = vmatmul.mubr.bf16.gmra.mrb[0].mxu0 %v978
        %v1154 = vpop.f32.mrb[0].mxu0
        %v1155 = vadd.f32 0.0, %v1154
        %v1156 = vpop.f32.mrb[0].mxu0
        %v1157 = vpop.f32.mrb[0].mxu0
        %v1158 = vadd.f32 0.0, %v1157
        %v1159 = vpop.f32.mrb[0].mxu0
        %1160 = vmatprep.mubr.bf16.mxu0 %v981
        %1161 = vmatmul.mubr.bf16.gmra.mrb[0].mxu0 %v980
        %v1162 = vpop.f32.mrb[0].mxu0
        %v1163 = vadd.f32 0.0, %v1162
        %v1164 = vpop.f32.mrb[0].mxu0
        %v1165 = vpop.f32.mrb[0].mxu0
        %v1166 = vadd.f32 0.0, %v1165
        %v1167 = vpop.f32.mrb[0].mxu0
        %1168 = vmatprep.mubr.bf16.mxu0 %v983
        %1169 = vmatmul.mubr.bf16.gmra.mrb[0].mxu0 %v982
        %v1170 = vpop.f32.mrb[0].mxu0
        %v1171 = vadd.f32 0.0, %v1170
        %v1172 = vpop.f32.mrb[0].mxu0
        %v1173 = vpop.f32.mrb[0].mxu0
        %v1174 = vadd.f32 0.0, %v1173
        %v1175 = vpop.f32.mrb[0].mxu0
        %1176 = vdwg.mxu0
        %v1177 = vadd.f32 %v776, %v1051
        %v1178 = vadd.f32 %v777, %v1054
        %v1179 = vadd.f32 %v778, %v1059
        %v1180 = vadd.f32 %v779, %v1062
        %v1181 = vadd.f32 %v780, %v1067
        %v1182 = vadd.f32 %v781, %v1070
        %v1183 = vadd.f32 %v782, %v1075
        %v1184 = vadd.f32 %v783, %v1078
        %v1185 = vadd.f32 %v784, %v1083
        %v1186 = vadd.f32 %v785, %v1086
        %v1187 = vadd.f32 %v786, %v1091
        %v1188 = vadd.f32 %v787, %v1094
        %v1189 = vadd.f32 %v788, %v1099
        %v1190 = vadd.f32 %v789, %v1102
        %v1191 = vadd.f32 %v790, %v1107
        %v1192 = vadd.f32 %v791, %v1110
        %v1193 = vadd.f32 %v792, %v1115
        %v1194 = vadd.f32 %v793, %v1118
        %v1195 = vadd.f32 %v794, %v1123
        %v1196 = vadd.f32 %v795, %v1126
        %v1197 = vadd.f32 %v796, %v1131
        %v1198 = vadd.f32 %v797, %v1134
        %v1199 = vadd.f32 %v798, %v1139
        %v1200 = vadd.f32 %v799, %v1142
        %v1201 = vadd.f32 %v800, %v1147
        %v1202 = vadd.f32 %v801, %v1150
        %v1203 = vadd.f32 %v802, %v1155
        %v1204 = vadd.f32 %v803, %v1158
        %v1205 = vadd.f32 %v804, %v1163
        %v1206 = vadd.f32 %v805, %v1166
        %v1207 = vadd.f32 %v806, %v1171
        %v1208 = vadd.f32 %v807, %v1174
        %1209 = vst.msk [vmem:[#allocation2] sm:$0xff] %vm332, %v1177
        %1210 = vst.msk [vmem:[#allocation2 + $0x8] sm:$0xff] %vm332, %v1178
        %1211 = vst.msk [vmem:[#allocation2 + $0x10] sm:$0xff] %vm332, %v1179
        %1212 = vst.msk [vmem:[#allocation2 + $0x18] sm:$0xff] %vm332, %v1180
        %1213 = vst.msk [vmem:[#allocation2 + $0x20] sm:$0xff] %vm332, %v1181
        %1214 = vst.msk [vmem:[#allocation2 + $0x28] sm:$0xff] %vm332, %v1182
        %1215 = vst.msk [vmem:[#allocation2 + $0x30] sm:$0xff] %vm332, %v1183
        %1216 = vst.msk [vmem:[#allocation2 + $0x38] sm:$0xff] %vm332, %v1184
        %1217 = vst.msk [vmem:[#allocation2 + $0x40] sm:$0xff] %vm332, %v1185
        %1218 = vst.msk [vmem:[#allocation2 + $0x48] sm:$0xff] %vm332, %v1186
        %1219 = vst.msk [vmem:[#allocation2 + $0x50] sm:$0xff] %vm332, %v1187
        %1220 = vst.msk [vmem:[#allocation2 + $0x58] sm:$0xff] %vm332, %v1188
        %1221 = vst.msk [vmem:[#allocation2 + $0x60] sm:$0xff] %vm332, %v1189
        %1222 = vst.msk [vmem:[#allocation2 + $0x68] sm:$0xff] %vm332, %v1190
        %1223 = vst.msk [vmem:[#allocation2 + $0x70] sm:$0xff] %vm332, %v1191
        %1224 = vst.msk [vmem:[#allocation2 + $0x78] sm:$0xff] %vm332, %v1192
        %1225 = vst.msk [vmem:[#allocation2 + $0x80] sm:$0xff] %vm332, %v1193
        %1226 = vst.msk [vmem:[#allocation2 + $0x88] sm:$0xff] %vm332, %v1194
        %1227 = vst.msk [vmem:[#allocation2 + $0x90] sm:$0xff] %vm332, %v1195
        %1228 = vst.msk [vmem:[#allocation2 + $0x98] sm:$0xff] %vm332, %v1196
        %1229 = vst.msk [vmem:[#allocation2 + $0xa0] sm:$0xff] %vm332, %v1197
        %1230 = vst.msk [vmem:[#allocation2 + $0xa8] sm:$0xff] %vm332, %v1198
        %1231 = vst.msk [vmem:[#allocation2 + $0xb0] sm:$0xff] %vm332, %v1199
        %1232 = vst.msk [vmem:[#allocation2 + $0xb8] sm:$0xff] %vm332, %v1200
        %1233 = vst.msk [vmem:[#allocation2 + $0xc0] sm:$0xff] %vm332, %v1201
        %1234 = vst.msk [vmem:[#allocation2 + $0xc8] sm:$0xff] %vm332, %v1202
        %1235 = vst.msk [vmem:[#allocation2 + $0xd0] sm:$0xff] %vm332, %v1203
        %1236 = vst.msk [vmem:[#allocation2 + $0xd8] sm:$0xff] %vm332, %v1204
        %1237 = vst.msk [vmem:[#allocation2 + $0xe0] sm:$0xff] %vm332, %v1205
        %1238 = vst.msk [vmem:[#allocation2 + $0xe8] sm:$0xff] %vm332, %v1206
        %1239 = vst.msk [vmem:[#allocation2 + $0xf0] sm:$0xff] %vm332, %v1207
        %1240 = vst.msk [vmem:[#allocation2 + $0xf8] sm:$0xff] %vm332, %v1208
        %p1241 = scmp.eq.s32.totalorder %s24, 1
        // Predicated region
        $region49: #{tpu_custom_call.1} parent=39 // pred_check
          %p1242 = pneg %p1241
        $region50: #{tpu_custom_call.1} parent=39 // pred_check_branch
          %1244 = sbr.rel (%p1242) target = $region52
        $region51: #{tpu_custom_call.1} parent=39 // pred_region
          %v1245 = vld [vmem:[#allocation2] sm:$0xff]
          %v1246 = vld [vmem:[#allocation2 + $0x8] sm:$0xff]
          %v1247 = vld [vmem:[#allocation2 + $0x10] sm:$0xff]
          %v1248 = vld [vmem:[#allocation2 + $0x18] sm:$0xff]
          %v1249 = vld [vmem:[#allocation2 + $0x20] sm:$0xff]
          %v1250 = vld [vmem:[#allocation2 + $0x28] sm:$0xff]
          %v1251 = vld [vmem:[#allocation2 + $0x30] sm:$0xff]
          %v1252 = vld [vmem:[#allocation2 + $0x38] sm:$0xff]
          %v1253 = vld [vmem:[#allocation2 + $0x40] sm:$0xff]
          %v1254 = vld [vmem:[#allocation2 + $0x48] sm:$0xff]
          %v1255 = vld [vmem:[#allocation2 + $0x50] sm:$0xff]
          %v1256 = vld [vmem:[#allocation2 + $0x58] sm:$0xff]
          %v1257 = vld [vmem:[#allocation2 + $0x60] sm:$0xff]
          %v1258 = vld [vmem:[#allocation2 + $0x68] sm:$0xff]
          %v1259 = vld [vmem:[#allocation2 + $0x70] sm:$0xff]
          %v1260 = vld [vmem:[#allocation2 + $0x78] sm:$0xff]
          %v1261 = vld [vmem:[#allocation2 + $0x80] sm:$0xff]
          %v1262 = vld [vmem:[#allocation2 + $0x88] sm:$0xff]
          %v1263 = vld [vmem:[#allocation2 + $0x90] sm:$0xff]
          %v1264 = vld [vmem:[#allocation2 + $0x98] sm:$0xff]
          %v1265 = vld [vmem:[#allocation2 + $0xa0] sm:$0xff]
          %v1266 = vld [vmem:[#allocation2 + $0xa8] sm:$0xff]
          %v1267 = vld [vmem:[#allocation2 + $0xb0] sm:$0xff]
          %v1268 = vld [vmem:[#allocation2 + $0xb8] sm:$0xff]
          %v1269 = vld [vmem:[#allocation2 + $0xc0] sm:$0xff]
          %v1270 = vld [vmem:[#allocation2 + $0xc8] sm:$0xff]
          %v1271 = vld [vmem:[#allocation2 + $0xd0] sm:$0xff]
          %v1272 = vld [vmem:[#allocation2 + $0xd8] sm:$0xff]
          %v1273 = vld [vmem:[#allocation2 + $0xe0] sm:$0xff]
          %v1274 = vld [vmem:[#allocation2 + $0xe8] sm:$0xff]
          %v1275 = vld [vmem:[#allocation2 + $0xf0] sm:$0xff]
          %v1276 = vld [vmem:[#allocation2 + $0xf8] sm:$0xff]
          %v1277 = vld [vmem:[%s4] sm:$0x1]
          %v1279 = vlaneseq
          %v1280 = vshrl.u32 %v1279, 7
          %v1281 = vsub.s32 0, %v1280
          %v1282 = vrot.slane %v1277, %v1281
          %v1284 = vadd.f32 %v1245, %v1282
          %v1285 = vadd.f32 %v1246, %v1282
          %v1286 = vadd.f32 %v1247, %v1282
          %v1287 = vadd.f32 %v1248, %v1282
          %v1288 = vadd.f32 %v1249, %v1282
          %v1289 = vadd.f32 %v1250, %v1282
          %v1290 = vadd.f32 %v1251, %v1282
          %v1291 = vadd.f32 %v1252, %v1282
          %v1292 = vadd.f32 %v1253, %v1282
          %v1293 = vadd.f32 %v1254, %v1282
          %v1294 = vadd.f32 %v1255, %v1282
          %v1295 = vadd.f32 %v1256, %v1282
          %v1296 = vadd.f32 %v1257, %v1282
          %v1297 = vadd.f32 %v1258, %v1282
          %v1298 = vadd.f32 %v1259, %v1282
          %v1299 = vadd.f32 %v1260, %v1282
          %v1300 = vadd.f32 %v1261, %v1282
          %v1301 = vadd.f32 %v1262, %v1282
          %v1302 = vadd.f32 %v1263, %v1282
          %v1303 = vadd.f32 %v1264, %v1282
          %v1304 = vadd.f32 %v1265, %v1282
          %v1305 = vadd.f32 %v1266, %v1282
          %v1306 = vadd.f32 %v1267, %v1282
          %v1307 = vadd.f32 %v1268, %v1282
          %v1308 = vadd.f32 %v1269, %v1282
          %v1309 = vadd.f32 %v1270, %v1282
          %v1310 = vadd.f32 %v1271, %v1282
          %v1311 = vadd.f32 %v1272, %v1282
          %v1312 = vadd.f32 %v1273, %v1282
          %v1313 = vadd.f32 %v1274, %v1282
          %v1314 = vadd.f32 %v1275, %v1282
          %v1315 = vadd.f32 %v1276, %v1282
          %v1316 = vmax.f32 %v1284, 0.0
          %v1317 = vmax.f32 %v1285, 0.0
          %v1318 = vmax.f32 %v1286, 0.0
          %v1319 = vmax.f32 %v1287, 0.0
          %v1320 = vmax.f32 %v1288, 0.0
          %v1321 = vmax.f32 %v1289, 0.0
          %v1322 = vmax.f32 %v1290, 0.0
          %v1323 = vmax.f32 %v1291, 0.0
          %v1324 = vmax.f32 %v1292, 0.0
          %v1325 = vmax.f32 %v1293, 0.0
          %v1326 = vmax.f32 %v1294, 0.0
          %v1327 = vmax.f32 %v1295, 0.0
          %v1328 = vmax.f32 %v1296, 0.0
          %v1329 = vmax.f32 %v1297, 0.0
          %v1330 = vmax.f32 %v1298, 0.0
          %v1331 = vmax.f32 %v1299, 0.0
          %v1332 = vmax.f32 %v1300, 0.0
          %v1333 = vmax.f32 %v1301, 0.0
          %v1334 = vmax.f32 %v1302, 0.0
          %v1335 = vmax.f32 %v1303, 0.0
          %v1336 = vmax.f32 %v1304, 0.0
          %v1337 = vmax.f32 %v1305, 0.0
          %v1338 = vmax.f32 %v1306, 0.0
          %v1339 = vmax.f32 %v1307, 0.0
          %v1340 = vmax.f32 %v1308, 0.0
          %v1341 = vmax.f32 %v1309, 0.0
          %v1342 = vmax.f32 %v1310, 0.0
          %v1343 = vmax.f32 %v1311, 0.0
          %v1344 = vmax.f32 %v1312, 0.0
          %v1345 = vmax.f32 %v1313, 0.0
          %v1346 = vmax.f32 %v1314, 0.0
          %v1347 = vmax.f32 %v1315, 0.0
          %1348 = vst.msk [vmem:[%s285] sm:$0xff] %vm332, %v1316
          %1349 = vst.msk [vmem:[%s285 + $0x8] sm:$0xff] %vm332, %v1317
          %1350 = vst.msk [vmem:[%s285 + $0x10] sm:$0xff] %vm332, %v1318
          %1351 = vst.msk [vmem:[%s285 + $0x18] sm:$0xff] %vm332, %v1319
          %1352 = vst.msk [vmem:[%s285 + $0x20] sm:$0xff] %vm332, %v1320
          %1353 = vst.msk [vmem:[%s285 + $0x28] sm:$0xff] %vm332, %v1321
          %1354 = vst.msk [vmem:[%s285 + $0x30] sm:$0xff] %vm332, %v1322
          %1355 = vst.msk [vmem:[%s285 + $0x38] sm:$0xff] %vm332, %v1323
          %1356 = vst.msk [vmem:[%s285 + $0x40] sm:$0xff] %vm332, %v1324
          %1357 = vst.msk [vmem:[%s285 + $0x48] sm:$0xff] %vm332, %v1325
          %1358 = vst.msk [vmem:[%s285 + $0x50] sm:$0xff] %vm332, %v1326
          %1359 = vst.msk [vmem:[%s285 + $0x58] sm:$0xff] %vm332, %v1327
          %1360 = vst.msk [vmem:[%s285 + $0x60] sm:$0xff] %vm332, %v1328
          %1361 = vst.msk [vmem:[%s285 + $0x68] sm:$0xff] %vm332, %v1329
          %1362 = vst.msk [vmem:[%s285 + $0x70] sm:$0xff] %vm332, %v1330
          %1363 = vst.msk [vmem:[%s285 + $0x78] sm:$0xff] %vm332, %v1331
          %1364 = vst.msk [vmem:[%s285 + $0x80] sm:$0xff] %vm332, %v1332
          %1365 = vst.msk [vmem:[%s285 + $0x88] sm:$0xff] %vm332, %v1333
          %1366 = vst.msk [vmem:[%s285 + $0x90] sm:$0xff] %vm332, %v1334
          %1367 = vst.msk [vmem:[%s285 + $0x98] sm:$0xff] %vm332, %v1335
          %1368 = vst.msk [vmem:[%s285 + $0xa0] sm:$0xff] %vm332, %v1336
          %1369 = vst.msk [vmem:[%s285 + $0xa8] sm:$0xff] %vm332, %v1337
          %1370 = vst.msk [vmem:[%s285 + $0xb0] sm:$0xff] %vm332, %v1338
          %1371 = vst.msk [vmem:[%s285 + $0xb8] sm:$0xff] %vm332, %v1339
          %1372 = vst.msk [vmem:[%s285 + $0xc0] sm:$0xff] %vm332, %v1340
          %1373 = vst.msk [vmem:[%s285 + $0xc8] sm:$0xff] %vm332, %v1341
          %1374 = vst.msk [vmem:[%s285 + $0xd0] sm:$0xff] %vm332, %v1342
          %1375 = vst.msk [vmem:[%s285 + $0xd8] sm:$0xff] %vm332, %v1343
          %1376 = vst.msk [vmem:[%s285 + $0xe0] sm:$0xff] %vm332, %v1344
          %1377 = vst.msk [vmem:[%s285 + $0xe8] sm:$0xff] %vm332, %v1345
          %1378 = vst.msk [vmem:[%s285 + $0xf0] sm:$0xff] %vm332, %v1346
          %1379 = vst.msk [vmem:[%s285 + $0xf8] sm:$0xff] %vm332, %v1347
        $region52: #{tpu_custom_call.1} parent=39 // pred_fallthru
          _
        %s1380 = smul.u32 32, %s23
        %p1381 = scmp.lt.s32.totalorder %s1380, 63
        %s1382 = scalar_select %p1381, %s1380, 63
        %s1383 = smul.addr %s1382, 8
        %s1384 = scalar_lea.vmem %s5, %s1383
        // Predicated region
        $region53: #{tpu_custom_call.1} parent=39 // pred_check
          %p1385 = pneg %p166
        $region54: #{tpu_custom_call.1} parent=39 // pred_check_branch
          %1387 = sbr.rel (%p1385) target = $region56
        $region55: #{tpu_custom_call.1} parent=39 // pred_region
          %s1388 = smul.u32 32, %s23
        $region56: #{tpu_custom_call.1} parent=39 // pred_fallthru
          _
      $region40: #{tpu_custom_call.1} parent=5 // pred_fallthru
        _
      %p1389 = scmp.le.s32.totalorder 2, %s14
      // Predicated region
      $region57: #{tpu_custom_call.1} parent=5 // pred_check
        %p1390 = pneg %p1389
      $region58: #{tpu_custom_call.1} parent=5 // pred_check_branch
        %1392 = sbr.rel (%p1390) target = $region60
      $region59: #{tpu_custom_call.1} parent=5 // pred_region
        %s1393 = ssub.s32 %s14, 2
        // Predicated region
        $region61: #{tpu_custom_call.1} parent=59 // pred_check
          %p1394 = pneg %p172
        $region62: #{tpu_custom_call.1} parent=59 // pred_check_branch
          %1396 = sbr.rel (%p1394) target = $region64
        $region63: #{tpu_custom_call.1} parent=59 // pred_region
          %s1397 = smul.u32 32, %s25
          %p1398 = scmp.lt.s32.totalorder %s1397, 63
          %s1399 = scalar_select %p1398, %s1397, 63
          %s1400 = smul.addr %s1399, 8
          %s1401 = scalar_lea.vmem %s5, %s1400
        $region64: #{tpu_custom_call.1} parent=59 // pred_fallthru
          _
      $region60: #{tpu_custom_call.1} parent=5 // pred_fallthru
        _
    $region6: #{tpu_custom_call.1} parent=1 // loop_footer
      %s18 = sadd.s32 1, %s14
    $region7: #{tpu_custom_call.1} parent=1 // loop_footer_branch
      %13 = sbr.rel target = $region3
    $region8: #{tpu_custom_call.1} parent=1 // loop_exit
      _
    %1402 = vsyncpa [#allocation4], 1
    %s1403 = scalar_lea.sflag [#allocation4], 1
    %1404 = vsyncpa %s1403, 1

</llo_original>
